<compile_context>
chip_gen: v5e
topology: v5e:2x2
jax: 0.10.0
libtpu: 0.0.40
codegen_flags: <defaults>
</compile_context>

<pallas_src>
import math

import jax
import jax.numpy as jnp
from jax.experimental import pallas as pl
from jax.experimental.pallas import tpu as pltpu


# ----------------------------------------------------------------------------
# Fused Pallas kernel
# ----------------------------------------------------------------------------
def make_fused_msg_kernel(num_scales, layer_counts, k_list, tp, has_points):
    """Builds the fused kernel body.

    Ref order (inputs, then one output):
      for each scale s:
        gxyz_s : (TP, K_s, 3)      grouped xyz (center NOT yet subtracted), f32
        gpts_s : (TP*K_s, C)       grouped point features (if has_points), cdtype
      centers  : (TP, 3)           sampled centers, f32
      for each scale s:
        w0a_s (3, C1) f32, [w0b_s (C, C1) cdtype], b0_s (1, C1) f32,
        then (w_l f32, b_l f32) for layers l >= 1
      wa_s     : (C_last_s, Cagg_pad) f32   per-scale aggregation weight slice
      ba       : (1, Cagg_pad)     f32
      out      : (TP, Cagg_pad)    f32
    """
    per_scale_nparams = [(3 if has_points else 2) + 2 * (lc - 1)
                         for lc in layer_counts]

    def kernel(*refs):
        pos = 0
        gxyz_refs, gpts_refs = [], []
        for _ in range(num_scales):
            gxyz_refs.append(refs[pos]); pos += 1
            if has_points:
                gpts_refs.append(refs[pos]); pos += 1
        ctr_ref = refs[pos]; pos += 1
        scale_params = []
        for s in range(num_scales):
            n = per_scale_nparams[s]
            scale_params.append(refs[pos:pos + n]); pos += n
        wa_refs = refs[pos:pos + num_scales]; pos += num_scales
        ba_ref = refs[pos]; pos += 1
        out_ref = refs[pos]

        ctr = ctr_ref[...]                                   # (TP, 3) f32
        acc = jnp.zeros(out_ref.shape, jnp.float32)

        for s in range(num_scales):
            k = k_list[s]
            p = scale_params[s]
            # rel_xyz folded in-kernel: subtract the center in registers instead
            # of materializing (B, S, K, 3) rel_xyz in HBM.
            rel = gxyz_refs[s][...] - ctr[:, None, :]        # (TP, K, 3)
            rel2 = rel.reshape(tp * k, 3)                    # tile-aligned view (K % 8 == 0)
            # Layer 0: concat([rel, pts]) @ W0 == rel @ W0[:3] + pts @ W0[3:]
            if has_points:
                h = (jnp.dot(rel2, p[0][...], preferred_element_type=jnp.float32)
                     + jnp.dot(gpts_refs[s][...], p[1][...],
                               preferred_element_type=jnp.float32)
                     + p[2][...])
                rest = p[3:]
            else:
                h = (jnp.dot(rel2, p[0][...], preferred_element_type=jnp.float32)
                     + p[1][...])
                rest = p[2:]
            h = jnp.maximum(h, 0.0)                          # f32; stays f32 (no downcasts)
            for l in range(layer_counts[s] - 1):
                h = jnp.maximum(
                    jnp.dot(h, rest[2 * l][...], preferred_element_type=jnp.float32)
                    + rest[2 * l + 1][...], 0.0)
            # Max-pool over nsample: tile-aligned free view (K % 8 == 0, lane dim unchanged).
            pooled = jnp.max(h.reshape(tp, k, h.shape[-1]), axis=1)  # (TP, C_last)
            # concat-then-matmul == sum of per-scale partial matmuls (f32 accumulator).
            acc = acc + jnp.dot(pooled, wa_refs[s][...],
                                preferred_element_type=jnp.float32)

        # Lane-dense (Cagg_pad multiple of 128) writeback -> unmasked stores.
        out_ref[...] = jnp.maximum(acc + ba_ref[...], 0.0)

    return kernel


def _round_up(x, m):
    return ((x + m - 1) // m) * m


def _estimate_vmem_per_tp(k_list, pts_itemsize, has_points):
    """Lane-padded VMEM bytes per unit of TP for one grid step (double-buffered
    inputs + padded output block + rough f32 hidden-activation footprint)."""
    per_tp = 0
    for k in k_list:
        per_tp += 2 * k * 128 * 4                  # gxyz (3 -> 128 lanes), f32, 2 buffers
        if has_points:
            per_tp += 2 * k * 128 * pts_itemsize   # gpts (C -> 128 lanes), 2 buffers
        per_tp += k * 128 * 4                      # live f32 hidden activations (rough)
    per_tp += 2 * 128 * 4                          # centers, 2 buffers
    per_tp += 2 * 128 * 4                          # padded f32 output block, 2 buffers
    return per_tp


def _choose_p_tile(bp, k_list, pts_itemsize, has_points, *,
                   vmem_budget_bytes=24 << 20, target=512):
    """Pick the center-tile size TP (always a multiple of 8).

    Per-step compute is tiny (channels <= 32), so fewer/bigger steps win: take the
    biggest tile under the per-step VMEM budget, capped at `target`. When the whole
    problem fits one tile we still prefer 2 grid steps (both v7x TensorCores get
    work) but never shrink below that just to add steps.  BP values that don't
    divide are handled by padding in run_fused_msg (no untiled fallback).
    """
    per_tp = _estimate_vmem_per_tp(k_list, pts_itemsize, has_points)
    tp_max = max(8, (vmem_budget_bytes // per_tp) // 8 * 8)
    tp_max = min(tp_max, target)
    if bp > tp_max:
        return tp_max
    if bp >= 16:
        return min(tp_max, _round_up((bp + 1) // 2, 8))
    return _round_up(bp, 8)


def run_fused_msg(gxyz_list, gpts_list, centers, scale_params, wa_splits, ba,
                  *, bp, k_list, layer_counts, cagg_pad, p_tile=None):
    """gxyz_list[s]: (BP, K_s, 3) f32; gpts_list[s]: (BP, K_s, C) or None;
    centers: (BP, 3) f32  ->  (BP_pad, Cagg_pad) f32 (trimmed by the caller)."""
    num_scales = len(gxyz_list)
    has_points = (num_scales > 0) and (gpts_list[0] is not None)
    pts_itemsize = gpts_list[0].dtype.itemsize if has_points else 0

    tp = p_tile if p_tile is not None else _choose_p_tile(
        bp, k_list, pts_itemsize, has_points)
    bp_pad = _round_up(bp, tp)
    grid = (bp_pad // tp,)

    # Pad the flattened-center axis so BP_pad % TP == 0 (output trimmed by caller).
    pad = bp_pad - bp
    if pad:
        gxyz_list = [jnp.pad(g, ((0, pad), (0, 0), (0, 0))) for g in gxyz_list]
        if has_points:
            gpts_list = [jnp.pad(g, ((0, pad), (0, 0), (0, 0))) for g in gpts_list]
        centers = jnp.pad(centers, ((0, pad), (0, 0)))

    args, in_specs = [], []
    for s in range(num_scales):
        k = k_list[s]
        args.append(gxyz_list[s])
        in_specs.append(pl.BlockSpec((tp, k, 3), lambda t: (t, 0, 0)))
        if has_points:
            c = gpts_list[s].shape[-1]
            # (BP_pad, K, C) -> (BP_pad*K, C): free leading-dim merge in XLA.
            args.append(gpts_list[s].reshape(bp_pad * k, c))
            in_specs.append(pl.BlockSpec((tp * k, c), lambda t: (t, 0)))
    args.append(centers)
    in_specs.append(pl.BlockSpec((tp, 3), lambda t: (t, 0)))
    # Weights/biases: constant block index -> resident across grid steps.
    for sp in scale_params:
        for w in sp:
            args.append(w)
            in_specs.append(pl.BlockSpec(w.shape, lambda t: (0, 0)))
    for wa_s in wa_splits:
        args.append(wa_s)
        in_specs.append(pl.BlockSpec(wa_s.shape, lambda t: (0, 0)))
    args.append(ba)
    in_specs.append(pl.BlockSpec(ba.shape, lambda t: (0, 0)))

    return pl.pallas_call(
        make_fused_msg_kernel(num_scales, list(layer_counts), list(k_list), tp,
                              has_points),
        out_shape=jax.ShapeDtypeStruct((bp_pad, cagg_pad), jnp.float32),
        grid=grid,
        in_specs=in_specs,
        out_specs=pl.BlockSpec((tp, cagg_pad), lambda t: (t, 0)),
        compiler_params=pltpu.CompilerParams(
            dimension_semantics=("parallel",),
            # Above every generation's scoped-VMEM default (v5e 16 / v6e 32 /
            # v7x 32 MiB) and safely below v7x's 64 MiB physical per-TC VMEM.
            vmem_limit_bytes=48 * 1024 * 1024),
    )(*args)


# ----------------------------------------------------------------------------
# Plain-JAX glue: FPS, ball query, grouping (data-dependent gathers)
# ----------------------------------------------------------------------------
def batched_gather(x, idx):
    """x: (B, N, C); idx: (B, ...) int32 -> (B, ..., C)."""
    return jax.vmap(lambda p, i: p[i])(x, idx)


def farthest_point_sample(xyz, npoint):
    """D-FPS. xyz: (B, N, 3) -> (B, npoint) int32. Starts from index 0 (CUDA impl).
    TODO(synk): sequential O(npoint*N) loop; chunk/fuse if it lands on the critical
                path at large N."""
    B, N, _ = xyz.shape

    def body(i, carry):
        dist, idxs, farthest = carry
        idxs = idxs.at[:, i].set(farthest)
        centroid = jax.vmap(lambda p, j: p[j])(xyz, farthest)      # (B, 3)
        d = jnp.sum((xyz - centroid[:, None, :]) ** 2, axis=-1)    # (B, N)
        dist = jnp.minimum(dist, d)
        farthest = jnp.argmax(dist, axis=-1).astype(jnp.int32)
        return dist, idxs, farthest

    dist0 = jnp.full((B, N), 1e10, dtype=jnp.float32)
    idxs0 = jnp.zeros((B, npoint), dtype=jnp.int32)
    far0 = jnp.zeros((B,), dtype=jnp.int32)
    _, idxs, _ = jax.lax.fori_loop(0, npoint, body, (dist0, idxs0, far0))
    return idxs


def square_distance(a, b):
    """a: (B, S, 3), b: (B, N, 3) -> (B, S, N)."""
    return jnp.sum((a[:, :, None, :] - b[:, None, :, :]) ** 2, axis=-1)


def ball_query(radius, nsample, xyz, new_xyz):
    """xyz: (B, N, 3), new_xyz: (B, S, 3) -> idx (B, S, nsample) int32.

    First nsample points (in index order) within `radius`; slots past the found
    count are filled with the first found index (0 if no neighbor) — same
    convention as pointnet2's CUDA ball_query.  Top-k partial selection, no full
    sort over N.
    """
    N = xyz.shape[1]
    sqrd = square_distance(new_xyz, xyz)                       # (B, S, N)
    mask = sqrd < radius * radius
    cand = jnp.where(mask, jnp.arange(N, dtype=jnp.int32), jnp.int32(N))
    neg_smallest, _ = jax.lax.top_k(-cand, nsample)            # descending
    cand = -neg_smallest                                       # ascending indices
    first = cand[:, :, 0:1]
    first = jnp.where(first == N, jnp.int32(0), first)
    idx = jnp.where(cand == N, first, cand)
    return idx.astype(jnp.int32)


# ----------------------------------------------------------------------------
# Module forward
# ----------------------------------------------------------------------------
def pointnet_sa_module_msg(xyz, points, params, npoint, radius_list, nsample_list,
                           compute_dtype=jnp.float32):
    """xyz: (B, N, 3), points: (B, N, C) or None -> (new_xyz, new_points, fps_idx).

    new_xyz:    (B, npoint, 3)
    new_points: (B, npoint, aggregation_channel)
    fps_idx:    (B, npoint) int32

    compute_dtype: jnp.float32 (exact, default) or jnp.bfloat16 (recommended on
    v6e/v7x: halves the dominant grouped-feature HBM->VMEM DMA; hidden activations
    and all accumulation stay f32).
    """
    B, N, _ = xyz.shape
    bp = B * npoint

    # ---- FPS (D-FPS over the full range; fps_sample_range = -1) ----
    fps_idx = farthest_point_sample(xyz, npoint)
    new_xyz = batched_gather(xyz, fps_idx)                     # (B, npoint, 3)

    # ---- multi-scale grouping: gathers only; rel_xyz + concat happen in-kernel ----
    gxyz_list, gpts_list = [], []
    for radius, nsample in zip(radius_list, nsample_list):
        idx = ball_query(radius, nsample, xyz, new_xyz)        # (B, S, K)
        grouped_xyz = batched_gather(xyz, idx)                 # (B, S, K, 3)
        gxyz_list.append(grouped_xyz.reshape(bp, nsample, 3).astype(jnp.float32))
        if points is not None:
            grouped_pts = batched_gather(points, idx)          # (B, S, K, C)
            gpts_list.append(grouped_pts.reshape(
                bp, nsample, points.shape[-1]).astype(compute_dtype))
        else:
            gpts_list.append(None)
    centers = new_xyz.reshape(bp, 3).astype(jnp.float32)

    # ---- per-scale kernel params: W0 split (xyz part / feature part); hidden f32 ----
    scale_params, layer_counts, out_chans = [], [], []
    for ws, bs in params["mlps"]:
        layer_counts.append(len(ws))
        out_chans.append(ws[-1].shape[1])
        w0 = ws[0]
        sp = [w0[:3].astype(jnp.float32)]
        if points is not None:
            sp.append(w0[3:].astype(compute_dtype))
        sp.append(bs[0].astype(jnp.float32))
        for w, b in zip(ws[1:], bs[1:]):
            sp.extend([w.astype(jnp.float32), b.astype(jnp.float32)])
        scale_params.append(sp)

    # ---- aggregation weight: pre-split per scale + zero-pad to a lane-dense Cagg ----
    wa, ba = params["agg"]
    cagg = wa.shape[1]
    cagg_pad = _round_up(cagg, 128)
    wa_splits, off = [], 0
    for c in out_chans:
        wa_s = wa[off:off + c].astype(jnp.float32)
        wa_splits.append(jnp.pad(wa_s, ((0, 0), (0, cagg_pad - cagg))))
        off += c
    ba_pad = jnp.pad(ba.astype(jnp.float32), ((0, 0), (0, cagg_pad - cagg)))

    # ---- fused SharedMLP + max-pool + aggregation Conv1d (one pallas_call) ----
    out = run_fused_msg(gxyz_list, gpts_list, centers, scale_params, wa_splits,
                        ba_pad, bp=bp, k_list=list(nsample_list),
                        layer_counts=layer_counts, cagg_pad=cagg_pad)
    new_points = out[:bp, :cagg].reshape(B, npoint, cagg)
    return new_xyz, new_points, fps_idx


# ----------------------------------------------------------------------------
# Pure-JAX reference of the fused math (for self-checks in __main__)
# ----------------------------------------------------------------------------
def reference_forward(xyz, points, params, npoint, radius_list, nsample_list):
    B, N, _ = xyz.shape
    fps_idx = farthest_point_sample(xyz, npoint)
    new_xyz = batched_gather(xyz, fps_idx)
    outs = []
    for i, (radius, nsample) in enumerate(zip(radius_list, nsample_list)):
        idx = ball_query(radius, nsample, xyz, new_xyz)
        rel = batched_gather(xyz, idx) - new_xyz[:, :, None, :]
        feat = jnp.concatenate([rel, batched_gather(points, idx)], axis=-1)
        ws, bs = params["mlps"][i]
        h = feat
        for w, b in zip(ws, bs):
            h = jnp.maximum(
                jnp.einsum("bpkc,cd->bpkd", h, w,
                           precision=jax.lax.Precision.HIGHEST) + b, 0.0)
        outs.append(jnp.max(h, axis=2))
    cat = jnp.concatenate(outs, axis=-1)
    wa, ba = params["agg"]
    agg = jnp.maximum(
        jnp.einsum("bpc,cd->bpd", cat, wa,
                   precision=jax.lax.Precision.HIGHEST) + ba, 0.0)
    return new_xyz, agg, fps_idx


# ----------------------------------------------------------------------------
# Deterministic parameter construction (SharedMLP convs + aggregation Conv1d)
# ----------------------------------------------------------------------------
def init_params(key, pre_channel, mlp_list, aggregation_channel):
    params = {"mlps": []}
    for mlp_spec in mlp_list:
        weights, biases = [], []
        c = pre_channel + 3
        for cout in mlp_spec:
            key, kw, kb = jax.random.split(key, 3)
            w = jax.random.normal(kw, (c, cout), dtype=jnp.float32) / math.sqrt(c)
            b = 0.01 * jax.random.normal(kb, (1, cout), dtype=jnp.float32)
            weights.append(w)
            biases.append(b)
            c = cout
        params["mlps"].append((weights, biases))

    total = sum(m[-1] for m in mlp_list)
    key, kw, kb = jax.random.split(key, 3)
    wa = jax.random.normal(kw, (total, aggregation_channel),
                           dtype=jnp.float32) / math.sqrt(total)
    ba = 0.01 * jax.random.normal(kb, (1, aggregation_channel), dtype=jnp.float32)
    params["agg"] = (wa, ba)
    return params


# ----------------------------------------------------------------------------
if __name__ == "__main__":
    B, N, C = 2, 64, 4            # batch, ndataset, point feature channels
    npoint = 16
    radius_list = [0.2, 0.4]
    nsample_list = [8, 16]
    mlp_list = [[16, 16, 32], [16, 16, 32]]
    aggregation_channel = 32

    key = jax.random.PRNGKey(0)
    kx, kp, kw = jax.random.split(key, 3)
    xyz = jax.random.uniform(kx, (B, N, 3), dtype=jnp.float32)
    points = jax.random.normal(kp, (B, N, C), dtype=jnp.float32)

    params = init_params(kw, pre_channel=C, mlp_list=mlp_list,
                         aggregation_channel=aggregation_channel)

    # ---- f32 path (default; exact semantics) ----
    fwd = jax.jit(lambda x, p: pointnet_sa_module_msg(
        x, p, params, npoint, radius_list, nsample_list,
        compute_dtype=jnp.float32))
    new_xyz, new_points, fps_idx = fwd(xyz, points)
    jax.block_until_ready((new_xyz, new_points, fps_idx))

    assert new_xyz.shape == (B, npoint, 3)
    assert new_points.shape == (B, npoint, aggregation_channel)
    assert fps_idx.shape == (B, npoint) and fps_idx.dtype == jnp.int32

    ref_xyz, ref_points, ref_idx = jax.jit(lambda x, p: reference_forward(
        x, p, params, npoint, radius_list, nsample_list))(xyz, points)
    assert bool(jnp.array_equal(fps_idx, ref_idx))
    assert bool(jnp.allclose(new_xyz, ref_xyz))
    assert bool(jnp.allclose(new_points, ref_points, atol=5e-2, rtol=5e-2))

    # ---- awkward B*npoint (not a multiple of the tile): exercises pad/trim path ----
    npoint2 = 12
    out2_xyz, out2_pts, _ = jax.jit(lambda x, p: pointnet_sa_module_msg(
        x, p, params, npoint2, radius_list, nsample_list))(xyz, points)
    ref2_xyz, ref2_pts, _ = jax.jit(lambda x, p: reference_forward(
        x, p, params, npoint2, radius_list, nsample_list))(xyz, points)
    jax.block_until_ready(out2_pts)
    assert out2_pts.shape == (B, npoint2, aggregation_channel)
    assert bool(jnp.allclose(out2_pts, ref2_pts, atol=5e-2, rtol=5e-2))

    # ---- bf16 grouped-feature path (v6e/v7x: halves dominant DMA; hidden f32) ----
    fwd_bf16 = jax.jit(lambda x, p: pointnet_sa_module_msg(
        x, p, params, npoint, radius_list, nsample_list,
        compute_dtype=jnp.bfloat16))
    _, new_points_bf16, _ = fwd_bf16(xyz, points)
    jax.block_until_ready(new_points_bf16)
    assert bool(jnp.all(jnp.isfinite(new_points_bf16)))

    print("KERNEL_OK")
</pallas_src>

<mosaic_0001>
module attributes {stable_mosaic.version = 11 : i64} {
  func.func @kernel(%arg0: i32, %arg1: memref<16x8x3xf32, #tpu.memory_space<vmem>>, %arg2: memref<128x4xf32, #tpu.memory_space<vmem>>, %arg3: memref<16x16x3xf32, #tpu.memory_space<vmem>>, %arg4: memref<256x4xf32, #tpu.memory_space<vmem>>, %arg5: memref<16x3xf32, #tpu.memory_space<vmem>>, %arg6: memref<3x16xf32, #tpu.memory_space<vmem>>, %arg7: memref<4x16xf32, #tpu.memory_space<vmem>>, %arg8: memref<1x16xf32, #tpu.memory_space<vmem>>, %arg9: memref<16x16xf32, #tpu.memory_space<vmem>>, %arg10: memref<1x16xf32, #tpu.memory_space<vmem>>, %arg11: memref<16x32xf32, #tpu.memory_space<vmem>>, %arg12: memref<1x32xf32, #tpu.memory_space<vmem>>, %arg13: memref<3x16xf32, #tpu.memory_space<vmem>>, %arg14: memref<4x16xf32, #tpu.memory_space<vmem>>, %arg15: memref<1x16xf32, #tpu.memory_space<vmem>>, %arg16: memref<16x16xf32, #tpu.memory_space<vmem>>, %arg17: memref<1x16xf32, #tpu.memory_space<vmem>>, %arg18: memref<16x32xf32, #tpu.memory_space<vmem>>, %arg19: memref<1x32xf32, #tpu.memory_space<vmem>>, %arg20: memref<32x128xf32, #tpu.memory_space<vmem>>, %arg21: memref<32x128xf32, #tpu.memory_space<vmem>>, %arg22: memref<1x128xf32, #tpu.memory_space<vmem>>, %arg23: memref<16x128xf32, #tpu.memory_space<vmem>>) attributes {dimension_semantics = [#tpu.dimension_semantics<parallel>], iteration_bounds = array<i64: 2>, scalar_prefetch = 0 : i64, scratch_operands = 0 : i64, tpu.core_type = #tpu.core_type<tc>, window_params = [{transform_indices = @transform_0, window_bounds = array<i64: 16, 8, 3>}, {transform_indices = @transform_1, window_bounds = array<i64: 128, 4>}, {transform_indices = @transform_2, window_bounds = array<i64: 16, 16, 3>}, {transform_indices = @transform_3, window_bounds = array<i64: 256, 4>}, {transform_indices = @transform_4, window_bounds = array<i64: 16, 3>}, {pipeline_mode = #tpu.pipeline_mode<synchronous>, transform_indices = @transform_5, window_bounds = array<i64: 3, 16>}, {pipeline_mode = #tpu.pipeline_mode<synchronous>, transform_indices = @transform_6, window_bounds = array<i64: 4, 16>}, {pipeline_mode = #tpu.pipeline_mode<synchronous>, transform_indices = @transform_7, window_bounds = array<i64: 1, 16>}, {pipeline_mode = #tpu.pipeline_mode<synchronous>, transform_indices = @transform_8, window_bounds = array<i64: 16, 16>}, {pipeline_mode = #tpu.pipeline_mode<synchronous>, transform_indices = @transform_9, window_bounds = array<i64: 1, 16>}, {pipeline_mode = #tpu.pipeline_mode<synchronous>, transform_indices = @transform_10, window_bounds = array<i64: 16, 32>}, {pipeline_mode = #tpu.pipeline_mode<synchronous>, transform_indices = @transform_11, window_bounds = array<i64: 1, 32>}, {pipeline_mode = #tpu.pipeline_mode<synchronous>, transform_indices = @transform_12, window_bounds = array<i64: 3, 16>}, {pipeline_mode = #tpu.pipeline_mode<synchronous>, transform_indices = @transform_13, window_bounds = array<i64: 4, 16>}, {pipeline_mode = #tpu.pipeline_mode<synchronous>, transform_indices = @transform_14, window_bounds = array<i64: 1, 16>}, {pipeline_mode = #tpu.pipeline_mode<synchronous>, transform_indices = @transform_15, window_bounds = array<i64: 16, 16>}, {pipeline_mode = #tpu.pipeline_mode<synchronous>, transform_indices = @transform_16, window_bounds = array<i64: 1, 16>}, {pipeline_mode = #tpu.pipeline_mode<synchronous>, transform_indices = @transform_17, window_bounds = array<i64: 16, 32>}, {pipeline_mode = #tpu.pipeline_mode<synchronous>, transform_indices = @transform_18, window_bounds = array<i64: 1, 32>}, {pipeline_mode = #tpu.pipeline_mode<synchronous>, transform_indices = @transform_19, window_bounds = array<i64: 32, 128>}, {pipeline_mode = #tpu.pipeline_mode<synchronous>, transform_indices = @transform_20, window_bounds = array<i64: 32, 128>}, {pipeline_mode = #tpu.pipeline_mode<synchronous>, transform_indices = @transform_21, window_bounds = array<i64: 1, 128>}, {transform_indices = @transform_22, window_bounds = array<i64: 16, 128>}]} {
    %c0 = arith.constant 0 : index
    %c0_0 = arith.constant 0 : index
    %0 = vector.load %arg5[%c0, %c0_0] : memref<16x3xf32, #tpu.memory_space<vmem>>, vector<16x3xf32>
    %cst = arith.constant 0.000000e+00 : f32
    %1 = vector.broadcast %cst : f32 to vector<16x128xf32>
    %c0_1 = arith.constant 0 : index
    %c0_2 = arith.constant 0 : index
    %c0_3 = arith.constant 0 : index
    %2 = vector.load %arg1[%c0_1, %c0_2, %c0_3] : memref<16x8x3xf32, #tpu.memory_space<vmem>>, vector<16x8x3xf32>
    %3 = vector.shape_cast %0 : vector<16x3xf32> to vector<16x1x3xf32>
    %4 = vector.broadcast %3 : vector<16x1x3xf32> to vector<16x8x3xf32>
    %5 = arith.subf %2, %4 : vector<16x8x3xf32>
    %6 = vector.shape_cast %5 : vector<16x8x3xf32> to vector<128x3xf32>
    %c0_4 = arith.constant 0 : index
    %c0_5 = arith.constant 0 : index
    %7 = vector.load %arg6[%c0_4, %c0_5] : memref<3x16xf32, #tpu.memory_space<vmem>>, vector<3x16xf32>
    %cst_6 = arith.constant dense<0.000000e+00> : vector<128x16xf32>
    %8 = tpu.matmul %6, %7, %cst_6 {dimension_numbers = #tpu.dot_dimension_numbers<[1], [0], [0], [1], [0, 0, 1, 1], [], []>} : vector<128x3xf32>, vector<3x16xf32>, vector<128x16xf32> -> vector<128x16xf32>
    %c0_7 = arith.constant 0 : index
    %c0_8 = arith.constant 0 : index
    %9 = vector.load %arg2[%c0_7, %c0_8] : memref<128x4xf32, #tpu.memory_space<vmem>>, vector<128x4xf32>
    %c0_9 = arith.constant 0 : index
    %c0_10 = arith.constant 0 : index
    %10 = vector.load %arg7[%c0_9, %c0_10] : memref<4x16xf32, #tpu.memory_space<vmem>>, vector<4x16xf32>
    %cst_11 = arith.constant dense<0.000000e+00> : vector<128x16xf32>
    %11 = tpu.matmul %9, %10, %cst_11 {dimension_numbers = #tpu.dot_dimension_numbers<[1], [0], [0], [1], [0, 0, 1, 1], [], []>} : vector<128x4xf32>, vector<4x16xf32>, vector<128x16xf32> -> vector<128x16xf32>
    %12 = arith.addf %8, %11 : vector<128x16xf32>
    %c0_12 = arith.constant 0 : index
    %c0_13 = arith.constant 0 : index
    %13 = vector.load %arg8[%c0_12, %c0_13] : memref<1x16xf32, #tpu.memory_space<vmem>>, vector<1x16xf32>
    %14 = vector.broadcast %13 : vector<1x16xf32> to vector<128x16xf32>
    %15 = arith.addf %12, %14 : vector<128x16xf32>
    %cst_14 = arith.constant 0.000000e+00 : f32
    %16 = vector.broadcast %cst_14 : f32 to vector<128x16xf32>
    %17 = arith.maximumf %15, %16 : vector<128x16xf32>
    %c0_15 = arith.constant 0 : index
    %c0_16 = arith.constant 0 : index
    %18 = vector.load %arg9[%c0_15, %c0_16] : memref<16x16xf32, #tpu.memory_space<vmem>>, vector<16x16xf32>
    %cst_17 = arith.constant dense<0.000000e+00> : vector<128x16xf32>
    %19 = tpu.matmul %17, %18, %cst_17 {dimension_numbers = #tpu.dot_dimension_numbers<[1], [0], [0], [1], [0, 0, 1, 1], [], []>} : vector<128x16xf32>, vector<16x16xf32>, vector<128x16xf32> -> vector<128x16xf32>
    %c0_18 = arith.constant 0 : index
    %c0_19 = arith.constant 0 : index
    %20 = vector.load %arg10[%c0_18, %c0_19] : memref<1x16xf32, #tpu.memory_space<vmem>>, vector<1x16xf32>
    %21 = vector.broadcast %20 : vector<1x16xf32> to vector<128x16xf32>
    %22 = arith.addf %19, %21 : vector<128x16xf32>
    %cst_20 = arith.constant 0.000000e+00 : f32
    %23 = vector.broadcast %cst_20 : f32 to vector<128x16xf32>
    %24 = arith.maximumf %22, %23 : vector<128x16xf32>
    %c0_21 = arith.constant 0 : index
    %c0_22 = arith.constant 0 : index
    %25 = vector.load %arg11[%c0_21, %c0_22] : memref<16x32xf32, #tpu.memory_space<vmem>>, vector<16x32xf32>
    %cst_23 = arith.constant dense<0.000000e+00> : vector<128x32xf32>
    %26 = tpu.matmul %24, %25, %cst_23 {dimension_numbers = #tpu.dot_dimension_numbers<[1], [0], [0], [1], [0, 0, 1, 1], [], []>} : vector<128x16xf32>, vector<16x32xf32>, vector<128x32xf32> -> vector<128x32xf32>
    %c0_24 = arith.constant 0 : index
    %c0_25 = arith.constant 0 : index
    %27 = vector.load %arg12[%c0_24, %c0_25] : memref<1x32xf32, #tpu.memory_space<vmem>>, vector<1x32xf32>
    %28 = vector.broadcast %27 : vector<1x32xf32> to vector<128x32xf32>
    %29 = arith.addf %26, %28 : vector<128x32xf32>
    %cst_26 = arith.constant 0.000000e+00 : f32
    %30 = vector.broadcast %cst_26 : f32 to vector<128x32xf32>
    %31 = arith.maximumf %29, %30 : vector<128x32xf32>
    %32 = vector.shape_cast %31 : vector<128x32xf32> to vector<16x8x32xf32>
    %cst_27 = arith.constant dense<0xFF800000> : vector<16x32xf32>
    %33 = vector.multi_reduction <maximumf>, %32, %cst_27 [1] : vector<16x8x32xf32> to vector<16x32xf32>
    %c0_28 = arith.constant 0 : index
    %c0_29 = arith.constant 0 : index
    %34 = vector.load %arg20[%c0_28, %c0_29] : memref<32x128xf32, #tpu.memory_space<vmem>>, vector<32x128xf32>
    %cst_30 = arith.constant dense<0.000000e+00> : vector<16x128xf32>
    %35 = tpu.matmul %33, %34, %cst_30 {dimension_numbers = #tpu.dot_dimension_numbers<[1], [0], [0], [1], [0, 0, 1, 1], [], []>} : vector<16x32xf32>, vector<32x128xf32>, vector<16x128xf32> -> vector<16x128xf32>
    %36 = arith.addf %1, %35 : vector<16x128xf32>
    %c0_31 = arith.constant 0 : index
    %c0_32 = arith.constant 0 : index
    %c0_33 = arith.constant 0 : index
    %37 = vector.load %arg3[%c0_31, %c0_32, %c0_33] : memref<16x16x3xf32, #tpu.memory_space<vmem>>, vector<16x16x3xf32>
    %38 = vector.shape_cast %0 : vector<16x3xf32> to vector<16x1x3xf32>
    %39 = vector.broadcast %38 : vector<16x1x3xf32> to vector<16x16x3xf32>
    %40 = arith.subf %37, %39 : vector<16x16x3xf32>
    %41 = vector.shape_cast %40 : vector<16x16x3xf32> to vector<256x3xf32>
    %c0_34 = arith.constant 0 : index
    %c0_35 = arith.constant 0 : index
    %42 = vector.load %arg13[%c0_34, %c0_35] : memref<3x16xf32, #tpu.memory_space<vmem>>, vector<3x16xf32>
    %cst_36 = arith.constant dense<0.000000e+00> : vector<256x16xf32>
    %43 = tpu.matmul %41, %42, %cst_36 {dimension_numbers = #tpu.dot_dimension_numbers<[1], [0], [0], [1], [0, 0, 1, 1], [], []>} : vector<256x3xf32>, vector<3x16xf32>, vector<256x16xf32> -> vector<256x16xf32>
    %c0_37 = arith.constant 0 : index
    %c0_38 = arith.constant 0 : index
    %44 = vector.load %arg4[%c0_37, %c0_38] : memref<256x4xf32, #tpu.memory_space<vmem>>, vector<256x4xf32>
    %c0_39 = arith.constant 0 : index
    %c0_40 = arith.constant 0 : index
    %45 = vector.load %arg14[%c0_39, %c0_40] : memref<4x16xf32, #tpu.memory_space<vmem>>, vector<4x16xf32>
    %cst_41 = arith.constant dense<0.000000e+00> : vector<256x16xf32>
    %46 = tpu.matmul %44, %45, %cst_41 {dimension_numbers = #tpu.dot_dimension_numbers<[1], [0], [0], [1], [0, 0, 1, 1], [], []>} : vector<256x4xf32>, vector<4x16xf32>, vector<256x16xf32> -> vector<256x16xf32>
    %47 = arith.addf %43, %46 : vector<256x16xf32>
    %c0_42 = arith.constant 0 : index
    %c0_43 = arith.constant 0 : index
    %48 = vector.load %arg15[%c0_42, %c0_43] : memref<1x16xf32, #tpu.memory_space<vmem>>, vector<1x16xf32>
    %49 = vector.broadcast %48 : vector<1x16xf32> to vector<256x16xf32>
    %50 = arith.addf %47, %49 : vector<256x16xf32>
    %cst_44 = arith.constant 0.000000e+00 : f32
    %51 = vector.broadcast %cst_44 : f32 to vector<256x16xf32>
    %52 = arith.maximumf %50, %51 : vector<256x16xf32>
    %c0_45 = arith.constant 0 : index
    %c0_46 = arith.constant 0 : index
    %53 = vector.load %arg16[%c0_45, %c0_46] : memref<16x16xf32, #tpu.memory_space<vmem>>, vector<16x16xf32>
    %cst_47 = arith.constant dense<0.000000e+00> : vector<256x16xf32>
    %54 = tpu.matmul %52, %53, %cst_47 {dimension_numbers = #tpu.dot_dimension_numbers<[1], [0], [0], [1], [0, 0, 1, 1], [], []>} : vector<256x16xf32>, vector<16x16xf32>, vector<256x16xf32> -> vector<256x16xf32>
    %c0_48 = arith.constant 0 : index
    %c0_49 = arith.constant 0 : index
    %55 = vector.load %arg17[%c0_48, %c0_49] : memref<1x16xf32, #tpu.memory_space<vmem>>, vector<1x16xf32>
    %56 = vector.broadcast %55 : vector<1x16xf32> to vector<256x16xf32>
    %57 = arith.addf %54, %56 : vector<256x16xf32>
    %cst_50 = arith.constant 0.000000e+00 : f32
    %58 = vector.broadcast %cst_50 : f32 to vector<256x16xf32>
    %59 = arith.maximumf %57, %58 : vector<256x16xf32>
    %c0_51 = arith.constant 0 : index
    %c0_52 = arith.constant 0 : index
    %60 = vector.load %arg18[%c0_51, %c0_52] : memref<16x32xf32, #tpu.memory_space<vmem>>, vector<16x32xf32>
    %cst_53 = arith.constant dense<0.000000e+00> : vector<256x32xf32>
    %61 = tpu.matmul %59, %60, %cst_53 {dimension_numbers = #tpu.dot_dimension_numbers<[1], [0], [0], [1], [0, 0, 1, 1], [], []>} : vector<256x16xf32>, vector<16x32xf32>, vector<256x32xf32> -> vector<256x32xf32>
    %c0_54 = arith.constant 0 : index
    %c0_55 = arith.constant 0 : index
    %62 = vector.load %arg19[%c0_54, %c0_55] : memref<1x32xf32, #tpu.memory_space<vmem>>, vector<1x32xf32>
    %63 = vector.broadcast %62 : vector<1x32xf32> to vector<256x32xf32>
    %64 = arith.addf %61, %63 : vector<256x32xf32>
    %cst_56 = arith.constant 0.000000e+00 : f32
    %65 = vector.broadcast %cst_56 : f32 to vector<256x32xf32>
    %66 = arith.maximumf %64, %65 : vector<256x32xf32>
    %67 = vector.shape_cast %66 : vector<256x32xf32> to vector<16x16x32xf32>
    %cst_57 = arith.constant dense<0xFF800000> : vector<16x32xf32>
    %68 = vector.multi_reduction <maximumf>, %67, %cst_57 [1] : vector<16x16x32xf32> to vector<16x32xf32>
    %c0_58 = arith.constant 0 : index
    %c0_59 = arith.constant 0 : index
    %69 = vector.load %arg21[%c0_58, %c0_59] : memref<32x128xf32, #tpu.memory_space<vmem>>, vector<32x128xf32>
    %cst_60 = arith.constant dense<0.000000e+00> : vector<16x128xf32>
    %70 = tpu.matmul %68, %69, %cst_60 {dimension_numbers = #tpu.dot_dimension_numbers<[1], [0], [0], [1], [0, 0, 1, 1], [], []>} : vector<16x32xf32>, vector<32x128xf32>, vector<16x128xf32> -> vector<16x128xf32>
    %71 = arith.addf %36, %70 : vector<16x128xf32>
    %c0_61 = arith.constant 0 : index
    %c0_62 = arith.constant 0 : index
    %72 = vector.load %arg22[%c0_61, %c0_62] : memref<1x128xf32, #tpu.memory_space<vmem>>, vector<1x128xf32>
    %73 = vector.broadcast %72 : vector<1x128xf32> to vector<16x128xf32>
    %74 = arith.addf %71, %73 : vector<16x128xf32>
    %cst_63 = arith.constant 0.000000e+00 : f32
    %75 = vector.broadcast %cst_63 : f32 to vector<16x128xf32>
    %76 = arith.maximumf %74, %75 : vector<16x128xf32>
    %c0_64 = arith.constant 0 : index
    %c0_65 = arith.constant 0 : index
    %77 = vector.load %arg23[%c0_64, %c0_65] : memref<16x128xf32, #tpu.memory_space<vmem>>, vector<16x128xf32>
    tpu.vector_store %arg23[%c0_64, %c0_65], %76 {strides = array<i32>} : memref<16x128xf32, #tpu.memory_space<vmem>>, vector<16x128xf32>,
    return
  }
  func.func @transform_0(%arg0: i32) -> (i32, i32, i32) {
    %c0_i32 = arith.constant 0 : i32
    %c0_i32_0 = arith.constant 0 : i32
    %c0_i32_1 = arith.constant 0 : i32
    return %arg0, %c0_i32, %c0_i32_0 : i32, i32, i32
  }
  func.func @transform_1(%arg0: i32) -> (i32, i32) {
    %c0_i32 = arith.constant 0 : i32
    %c0_i32_0 = arith.constant 0 : i32
    return %arg0, %c0_i32 : i32, i32
  }
  func.func @transform_2(%arg0: i32) -> (i32, i32, i32) {
    %c0_i32 = arith.constant 0 : i32
    %c0_i32_0 = arith.constant 0 : i32
    %c0_i32_1 = arith.constant 0 : i32
    return %arg0, %c0_i32, %c0_i32_0 : i32, i32, i32
  }
  func.func @transform_3(%arg0: i32) -> (i32, i32) {
    %c0_i32 = arith.constant 0 : i32
    %c0_i32_0 = arith.constant 0 : i32
    return %arg0, %c0_i32 : i32, i32
  }
  func.func @transform_4(%arg0: i32) -> (i32, i32) {
    %c0_i32 = arith.constant 0 : i32
    %c0_i32_0 = arith.constant 0 : i32
    return %arg0, %c0_i32 : i32, i32
  }
  func.func @transform_5(%arg0: i32) -> (i32, i32) {
    %c0_i32 = arith.constant 0 : i32
    %c0_i32_0 = arith.constant 0 : i32
    %c0_i32_1 = arith.constant 0 : i32
    return %c0_i32, %c0_i32_0 : i32, i32
  }
  func.func @transform_6(%arg0: i32) -> (i32, i32) {
    %c0_i32 = arith.constant 0 : i32
    %c0_i32_0 = arith.constant 0 : i32
    %c0_i32_1 = arith.constant 0 : i32
    return %c0_i32, %c0_i32_0 : i32, i32
  }
  func.func @transform_7(%arg0: i32) -> (i32, i32) {
    %c0_i32 = arith.constant 0 : i32
    %c0_i32_0 = arith.constant 0 : i32
    %c0_i32_1 = arith.constant 0 : i32
    return %c0_i32, %c0_i32_0 : i32, i32
  }
  func.func @transform_8(%arg0: i32) -> (i32, i32) {
    %c0_i32 = arith.constant 0 : i32
    %c0_i32_0 = arith.constant 0 : i32
    %c0_i32_1 = arith.constant 0 : i32
    return %c0_i32, %c0_i32_0 : i32, i32
  }
  func.func @transform_9(%arg0: i32) -> (i32, i32) {
    %c0_i32 = arith.constant 0 : i32
    %c0_i32_0 = arith.constant 0 : i32
    %c0_i32_1 = arith.constant 0 : i32
    return %c0_i32, %c0_i32_0 : i32, i32
  }
  func.func @transform_10(%arg0: i32) -> (i32, i32) {
    %c0_i32 = arith.constant 0 : i32
    %c0_i32_0 = arith.constant 0 : i32
    %c0_i32_1 = arith.constant 0 : i32
    return %c0_i32, %c0_i32_0 : i32, i32
  }
  func.func @transform_11(%arg0: i32) -> (i32, i32) {
    %c0_i32 = arith.constant 0 : i32
    %c0_i32_0 = arith.constant 0 : i32
    %c0_i32_1 = arith.constant 0 : i32
    return %c0_i32, %c0_i32_0 : i32, i32
  }
  func.func @transform_12(%arg0: i32) -> (i32, i32) {
    %c0_i32 = arith.constant 0 : i32
    %c0_i32_0 = arith.constant 0 : i32
    %c0_i32_1 = arith.constant 0 : i32
    return %c0_i32, %c0_i32_0 : i32, i32
  }
  func.func @transform_13(%arg0: i32) -> (i32, i32) {
    %c0_i32 = arith.constant 0 : i32
    %c0_i32_0 = arith.constant 0 : i32
    %c0_i32_1 = arith.constant 0 : i32
    return %c0_i32, %c0_i32_0 : i32, i32
  }
  func.func @transform_14(%arg0: i32) -> (i32, i32) {
    %c0_i32 = arith.constant 0 : i32
    %c0_i32_0 = arith.constant 0 : i32
    %c0_i32_1 = arith.constant 0 : i32
    return %c0_i32, %c0_i32_0 : i32, i32
  }
  func.func @transform_15(%arg0: i32) -> (i32, i32) {
    %c0_i32 = arith.constant 0 : i32
    %c0_i32_0 = arith.constant 0 : i32
    %c0_i32_1 = arith.constant 0 : i32
    return %c0_i32, %c0_i32_0 : i32, i32
  }
  func.func @transform_16(%arg0: i32) -> (i32, i32) {
    %c0_i32 = arith.constant 0 : i32
    %c0_i32_0 = arith.constant 0 : i32
    %c0_i32_1 = arith.constant 0 : i32
    return %c0_i32, %c0_i32_0 : i32, i32
  }
  func.func @transform_17(%arg0: i32) -> (i32, i32) {
    %c0_i32 = arith.constant 0 : i32
    %c0_i32_0 = arith.constant 0 : i32
    %c0_i32_1 = arith.constant 0 : i32
    return %c0_i32, %c0_i32_0 : i32, i32
  }
  func.func @transform_18(%arg0: i32) -> (i32, i32) {
    %c0_i32 = arith.constant 0 : i32
    %c0_i32_0 = arith.constant 0 : i32
    %c0_i32_1 = arith.constant 0 : i32
    return %c0_i32, %c0_i32_0 : i32, i32
  }
  func.func @transform_19(%arg0: i32) -> (i32, i32) {
    %c0_i32 = arith.constant 0 : i32
    %c0_i32_0 = arith.constant 0 : i32
    %c0_i32_1 = arith.constant 0 : i32
    return %c0_i32, %c0_i32_0 : i32, i32
  }
  func.func @transform_20(%arg0: i32) -> (i32, i32) {
    %c0_i32 = arith.constant 0 : i32
    %c0_i32_0 = arith.constant 0 : i32
    %c0_i32_1 = arith.constant 0 : i32
    return %c0_i32, %c0_i32_0 : i32, i32
  }
  func.func @transform_21(%arg0: i32) -> (i32, i32) {
    %c0_i32 = arith.constant 0 : i32
    %c0_i32_0 = arith.constant 0 : i32
    %c0_i32_1 = arith.constant 0 : i32
    return %c0_i32, %c0_i32_0 : i32, i32
  }
  func.func @transform_22(%arg0: i32) -> (i32, i32) {
    %c0_i32 = arith.constant 0 : i32
    %c0_i32_0 = arith.constant 0 : i32
    return %arg0, %c0_i32 : i32, i32
  }
}

</mosaic_0001>

<llo_original>
// kernel: custom-call.12
$region0: #{custom-call.12}
  %s0 = inlined_call_operand.vmem [shape: f32[2,64], index: 0, kind: output, shape index: {}]

// kernel: _lambda_.1
$region0: #{_lambda_.1}
  #allocation0 [shape = 'u32[]', space=smem, size = 0x4, offset = 0x4, fixed_abs, tag = 'smem constant byte address 0x4 - core index']
  #allocation1 [shape = 'u32[72,128]{1,0:T(1,128)}', space=vmem, size = 0x9000, scoped, tag = 'internal scratch']
  %s0 = inlined_call_operand.vmem [shape: f32[32,8,3], index: 0, kind: input, shape index: {}]
  %s1 = inlined_call_operand.vmem [shape: f32[256,4], index: 1, kind: input, shape index: {}]
  %s2 = inlined_call_operand.vmem [shape: f32[32,16,3], index: 2, kind: input, shape index: {}]
  %s3 = inlined_call_operand.vmem [shape: f32[512,4], index: 3, kind: input, shape index: {}]
  %s4 = inlined_call_operand.vmem [shape: f32[32,3], index: 4, kind: input, shape index: {}]
  %s5 = inlined_call_operand.vmem [shape: f32[3,16], index: 5, kind: input, shape index: {}]
  %s6 = inlined_call_operand.vmem [shape: f32[4,16], index: 6, kind: input, shape index: {}]
  %s7 = inlined_call_operand.vmem [shape: f32[1,16], index: 7, kind: input, shape index: {}]
  %s8 = inlined_call_operand.vmem [shape: f32[16,16], index: 8, kind: input, shape index: {}]
  %s9 = inlined_call_operand.vmem [shape: f32[1,16], index: 9, kind: input, shape index: {}]
  %s10 = inlined_call_operand.vmem [shape: f32[16,32], index: 10, kind: input, shape index: {}]
  %s11 = inlined_call_operand.vmem [shape: f32[1,32], index: 11, kind: input, shape index: {}]
  %s12 = inlined_call_operand.vmem [shape: f32[3,16], index: 12, kind: input, shape index: {}]
  %s13 = inlined_call_operand.vmem [shape: f32[4,16], index: 13, kind: input, shape index: {}]
  %s14 = inlined_call_operand.vmem [shape: f32[1,16], index: 14, kind: input, shape index: {}]
  %s15 = inlined_call_operand.vmem [shape: f32[16,16], index: 15, kind: input, shape index: {}]
  %s16 = inlined_call_operand.vmem [shape: f32[1,16], index: 16, kind: input, shape index: {}]
  %s17 = inlined_call_operand.vmem [shape: f32[16,32], index: 17, kind: input, shape index: {}]
  %s18 = inlined_call_operand.vmem [shape: f32[1,32], index: 18, kind: input, shape index: {}]
  %s19 = inlined_call_operand.vmem [shape: f32[32,128], index: 19, kind: input, shape index: {}]
  %s20 = inlined_call_operand.vmem [shape: f32[32,128], index: 20, kind: input, shape index: {}]
  %s21 = inlined_call_operand.vmem [shape: f32[1,128], index: 21, kind: input, shape index: {}]
  %s22 = inlined_call_operand.hbm [shape: f32[32,128], index: 22, kind: output, shape index: {}]
  %s23 = sld [smem:[#allocation0]]
  $region121: #{_lambda_.1} parent=0
    _
  %s25 = ssub.s32 1, %s23
  %s26 = scalar_select 0, %s25, %s23
  $region1: #{_lambda_.1} parent=0
    #allocation2 [shape = 'u8[16384]{0}', space=vmem, size = 0x4000, scoped, tag = 'output window, operand 0']
    #allocation3 [shape = 's32[2]{0}', space=sflag, size = 0x8, scoped, tag = 'scoped memory for _lambda_.1']
    %27 = vsyncpa [#allocation3], 0
    %s28 = scalar_lea.sflag [#allocation3], 1
    %29 = vsyncpa %s28, 0
    loop: start=0, step=1, limit=4
    $region2: #{_lambda_.1} parent=1 // loop_pre_header
      _
    $region3: #{_lambda_.1} parent=1 // loop_header
      %s31 = sphi 0, %s35
      %p32 = scmp.ge.s32.totalorder %s31, 4
      %s41 = sphi 0, %s43
      %s44 = sphi 0, %s41
      %s45 = sphi 0, %s44
      %s61 = sphi 0, %s45
      %s67 = sphi 0, %s69
      %s70 = sphi 0, %s67
      %s71 = sphi 0, %s70
      %s87 = sphi 0, %s71
      %s93 = sphi 0, %s95
      %s96 = sphi 0, %s93
      %s97 = sphi 0, %s96
      %s113 = sphi 0, %s97
      %s119 = sphi 0, %s121
      %s122 = sphi 0, %s119
      %s123 = sphi 0, %s122
      %s139 = sphi 0, %s123
      %s145 = sphi 0, %s147
      %s148 = sphi 0, %s145
      %s149 = sphi 0, %s148
      %s165 = sphi 0, %s149
      %s169 = sphi 0, %s169
      %s171 = sphi 0, %s169
      %s172 = sphi 0, %s171
      %s186 = sphi 0, %s172
      %s190 = sphi 0, %s190
      %s192 = sphi 0, %s190
      %s193 = sphi 0, %s192
      %s207 = sphi 0, %s193
      %s211 = sphi 0, %s211
      %s213 = sphi 0, %s211
      %s214 = sphi 0, %s213
      %s228 = sphi 0, %s214
      %s232 = sphi 0, %s232
      %s234 = sphi 0, %s232
      %s235 = sphi 0, %s234
      %s249 = sphi 0, %s235
      %s253 = sphi 0, %s253
      %s255 = sphi 0, %s253
      %s256 = sphi 0, %s255
      %s270 = sphi 0, %s256
      %s274 = sphi 0, %s274
      %s276 = sphi 0, %s274
      %s277 = sphi 0, %s276
      %s291 = sphi 0, %s277
      %s295 = sphi 0, %s295
      %s297 = sphi 0, %s295
      %s298 = sphi 0, %s297
      %s312 = sphi 0, %s298
      %s316 = sphi 0, %s316
      %s318 = sphi 0, %s316
      %s319 = sphi 0, %s318
      %s333 = sphi 0, %s319
      %s337 = sphi 0, %s337
      %s339 = sphi 0, %s337
      %s340 = sphi 0, %s339
      %s354 = sphi 0, %s340
      %s358 = sphi 0, %s358
      %s360 = sphi 0, %s358
      %s361 = sphi 0, %s360
      %s375 = sphi 0, %s361
      %s379 = sphi 0, %s379
      %s381 = sphi 0, %s379
      %s382 = sphi 0, %s381
      %s396 = sphi 0, %s382
      %s400 = sphi 0, %s400
      %s402 = sphi 0, %s400
      %s403 = sphi 0, %s402
      %s417 = sphi 0, %s403
      %s421 = sphi 0, %s421
      %s423 = sphi 0, %s421
      %s424 = sphi 0, %s423
      %s438 = sphi 0, %s424
      %s442 = sphi 0, %s442
      %s444 = sphi 0, %s442
      %s445 = sphi 0, %s444
      %s459 = sphi 0, %s445
      %s463 = sphi 0, %s463
      %s465 = sphi 0, %s463
      %s466 = sphi 0, %s465
      %s480 = sphi 0, %s466
      %s484 = sphi 0, %s484
      %s486 = sphi 0, %s484
      %s487 = sphi 0, %s486
      %s501 = sphi 0, %s487
      %s505 = sphi 0, %s505
      %s507 = sphi 0, %s505
      %s508 = sphi 0, %s507
      %s522 = sphi 0, %s508
      %s528 = sphi 0, %s530
      %s531 = sphi 0, %s528
      %s532 = sphi 0, %s531
      %s548 = sphi 0, %s532
    $region4: #{_lambda_.1} parent=1 // loop_header_branch
      %34 = sbr.rel (%p32) target = $region8
    $region5: #{_lambda_.1} parent=1 // loop_body
      %s36 = ssub.s32 %s31, 1
      %s37 = ssub.s32 %s31, 2
      %s38 = sadd.s32 %s31, 1
      %s39 = ssub.s32 %s31, %s38
      %p40 = scmp.eq.s32.totalorder %s39, 0
      %s42 = sadd.s32 %s41, 1
      %s43 = scalar_select %p40, %s41, %s42
      %p46 = pneg %p40
      %p47 = scmp.eq.s32.totalorder %s31, 1
      %p48 = por %p46, %p47
      %p49 = scmp.ne.s32.totalorder %s41, %s44
      %p50 = scmp.eq.s32.totalorder %s31, 0
      %p51 = por %p49, %p50
      %p52 = scmp.ne.s32.totalorder %s41, %s44
      %p53 = scmp.eq.s32.totalorder %s36, 1
      %p54 = por %p52, %p53
      %p55 = scmp.ne.s32.totalorder %s44, %s45
      %p56 = scmp.eq.s32.totalorder %s36, 0
      %p57 = por %p55, %p56
      %p58 = scmp.ne.s32.totalorder %s44, %s45
      %p59 = scmp.eq.s32.totalorder %s37, 1
      %p60 = por %p58, %p59
      %p62 = scmp.ne.s32.totalorder %s45, %s61
      %p63 = scmp.eq.s32.totalorder %s37, 0
      %p64 = por %p62, %p63
      %s65 = ssub.s32 %s31, %s38
      %p66 = scmp.eq.s32.totalorder %s65, 0
      %s68 = sadd.s32 %s67, 1
      %s69 = scalar_select %p66, %s67, %s68
      %p72 = pneg %p66
      %p73 = scmp.eq.s32.totalorder %s31, 1
      %p74 = por %p72, %p73
      %p75 = scmp.ne.s32.totalorder %s67, %s70
      %p76 = scmp.eq.s32.totalorder %s31, 0
      %p77 = por %p75, %p76
      %p78 = scmp.ne.s32.totalorder %s67, %s70
      %p79 = scmp.eq.s32.totalorder %s36, 1
      %p80 = por %p78, %p79
      %p81 = scmp.ne.s32.totalorder %s70, %s71
      %p82 = scmp.eq.s32.totalorder %s36, 0
      %p83 = por %p81, %p82
      %p84 = scmp.ne.s32.totalorder %s70, %s71
      %p85 = scmp.eq.s32.totalorder %s37, 1
      %p86 = por %p84, %p85
      %p88 = scmp.ne.s32.totalorder %s71, %s87
      %p89 = scmp.eq.s32.totalorder %s37, 0
      %p90 = por %p88, %p89
      %s91 = ssub.s32 %s31, %s38
      %p92 = scmp.eq.s32.totalorder %s91, 0
      %s94 = sadd.s32 %s93, 1
      %s95 = scalar_select %p92, %s93, %s94
      %p98 = pneg %p92
      %p99 = scmp.eq.s32.totalorder %s31, 1
      %p100 = por %p98, %p99
      %p101 = scmp.ne.s32.totalorder %s93, %s96
      %p102 = scmp.eq.s32.totalorder %s31, 0
      %p103 = por %p101, %p102
      %p104 = scmp.ne.s32.totalorder %s93, %s96
      %p105 = scmp.eq.s32.totalorder %s36, 1
      %p106 = por %p104, %p105
      %p107 = scmp.ne.s32.totalorder %s96, %s97
      %p108 = scmp.eq.s32.totalorder %s36, 0
      %p109 = por %p107, %p108
      %p110 = scmp.ne.s32.totalorder %s96, %s97
      %p111 = scmp.eq.s32.totalorder %s37, 1
      %p112 = por %p110, %p111
      %p114 = scmp.ne.s32.totalorder %s97, %s113
      %p115 = scmp.eq.s32.totalorder %s37, 0
      %p116 = por %p114, %p115
      %s117 = ssub.s32 %s31, %s38
      %p118 = scmp.eq.s32.totalorder %s117, 0
      %s120 = sadd.s32 %s119, 1
      %s121 = scalar_select %p118, %s119, %s120
      %p124 = pneg %p118
      %p125 = scmp.eq.s32.totalorder %s31, 1
      %p126 = por %p124, %p125
      %p127 = scmp.ne.s32.totalorder %s119, %s122
      %p128 = scmp.eq.s32.totalorder %s31, 0
      %p129 = por %p127, %p128
      %p130 = scmp.ne.s32.totalorder %s119, %s122
      %p131 = scmp.eq.s32.totalorder %s36, 1
      %p132 = por %p130, %p131
      %p133 = scmp.ne.s32.totalorder %s122, %s123
      %p134 = scmp.eq.s32.totalorder %s36, 0
      %p135 = por %p133, %p134
      %p136 = scmp.ne.s32.totalorder %s122, %s123
      %p137 = scmp.eq.s32.totalorder %s37, 1
      %p138 = por %p136, %p137
      %p140 = scmp.ne.s32.totalorder %s123, %s139
      %p141 = scmp.eq.s32.totalorder %s37, 0
      %p142 = por %p140, %p141
      %s143 = ssub.s32 %s31, %s38
      %p144 = scmp.eq.s32.totalorder %s143, 0
      %s146 = sadd.s32 %s145, 1
      %s147 = scalar_select %p144, %s145, %s146
      %p150 = pneg %p144
      %p151 = scmp.eq.s32.totalorder %s31, 1
      %p152 = por %p150, %p151
      %p153 = scmp.ne.s32.totalorder %s145, %s148
      %p154 = scmp.eq.s32.totalorder %s31, 0
      %p155 = por %p153, %p154
      %p156 = scmp.ne.s32.totalorder %s145, %s148
      %p157 = scmp.eq.s32.totalorder %s36, 1
      %p158 = por %p156, %p157
      %p159 = scmp.ne.s32.totalorder %s148, %s149
      %p160 = scmp.eq.s32.totalorder %s36, 0
      %p161 = por %p159, %p160
      %p162 = scmp.ne.s32.totalorder %s148, %s149
      %p163 = scmp.eq.s32.totalorder %s37, 1
      %p164 = por %p162, %p163
      %p166 = scmp.ne.s32.totalorder %s149, %s165
      %p167 = scmp.eq.s32.totalorder %s37, 0
      %p168 = por %p166, %p167
      %s170 = sadd.s32 %s169, 1
      %p173 = scmp.eq.s32.totalorder %s31, 1
      %p174 = scmp.ne.s32.totalorder %s169, %s171
      %p175 = scmp.eq.s32.totalorder %s31, 0
      %p176 = por %p174, %p175
      %p177 = scmp.ne.s32.totalorder %s169, %s171
      %p178 = scmp.eq.s32.totalorder %s36, 1
      %p179 = por %p177, %p178
      %p180 = scmp.ne.s32.totalorder %s171, %s172
      %p181 = scmp.eq.s32.totalorder %s36, 0
      %p182 = por %p180, %p181
      %p183 = scmp.ne.s32.totalorder %s171, %s172
      %p184 = scmp.eq.s32.totalorder %s37, 1
      %p185 = por %p183, %p184
      %p187 = scmp.ne.s32.totalorder %s172, %s186
      %p188 = scmp.eq.s32.totalorder %s37, 0
      %p189 = por %p187, %p188
      %s191 = sadd.s32 %s190, 1
      %p194 = scmp.eq.s32.totalorder %s31, 1
      %p195 = scmp.ne.s32.totalorder %s190, %s192
      %p196 = scmp.eq.s32.totalorder %s31, 0
      %p197 = por %p195, %p196
      %p198 = scmp.ne.s32.totalorder %s190, %s192
      %p199 = scmp.eq.s32.totalorder %s36, 1
      %p200 = por %p198, %p199
      %p201 = scmp.ne.s32.totalorder %s192, %s193
      %p202 = scmp.eq.s32.totalorder %s36, 0
      %p203 = por %p201, %p202
      %p204 = scmp.ne.s32.totalorder %s192, %s193
      %p205 = scmp.eq.s32.totalorder %s37, 1
      %p206 = por %p204, %p205
      %p208 = scmp.ne.s32.totalorder %s193, %s207
      %p209 = scmp.eq.s32.totalorder %s37, 0
      %p210 = por %p208, %p209
      %s212 = sadd.s32 %s211, 1
      %p215 = scmp.eq.s32.totalorder %s31, 1
      %p216 = scmp.ne.s32.totalorder %s211, %s213
      %p217 = scmp.eq.s32.totalorder %s31, 0
      %p218 = por %p216, %p217
      %p219 = scmp.ne.s32.totalorder %s211, %s213
      %p220 = scmp.eq.s32.totalorder %s36, 1
      %p221 = por %p219, %p220
      %p222 = scmp.ne.s32.totalorder %s213, %s214
      %p223 = scmp.eq.s32.totalorder %s36, 0
      %p224 = por %p222, %p223
      %p225 = scmp.ne.s32.totalorder %s213, %s214
      %p226 = scmp.eq.s32.totalorder %s37, 1
      %p227 = por %p225, %p226
      %p229 = scmp.ne.s32.totalorder %s214, %s228
      %p230 = scmp.eq.s32.totalorder %s37, 0
      %p231 = por %p229, %p230
      %s233 = sadd.s32 %s232, 1
      %p236 = scmp.eq.s32.totalorder %s31, 1
      %p237 = scmp.ne.s32.totalorder %s232, %s234
      %p238 = scmp.eq.s32.totalorder %s31, 0
      %p239 = por %p237, %p238
      %p240 = scmp.ne.s32.totalorder %s232, %s234
      %p241 = scmp.eq.s32.totalorder %s36, 1
      %p242 = por %p240, %p241
      %p243 = scmp.ne.s32.totalorder %s234, %s235
      %p244 = scmp.eq.s32.totalorder %s36, 0
      %p245 = por %p243, %p244
      %p246 = scmp.ne.s32.totalorder %s234, %s235
      %p247 = scmp.eq.s32.totalorder %s37, 1
      %p248 = por %p246, %p247
      %p250 = scmp.ne.s32.totalorder %s235, %s249
      %p251 = scmp.eq.s32.totalorder %s37, 0
      %p252 = por %p250, %p251
      %s254 = sadd.s32 %s253, 1
      %p257 = scmp.eq.s32.totalorder %s31, 1
      %p258 = scmp.ne.s32.totalorder %s253, %s255
      %p259 = scmp.eq.s32.totalorder %s31, 0
      %p260 = por %p258, %p259
      %p261 = scmp.ne.s32.totalorder %s253, %s255
      %p262 = scmp.eq.s32.totalorder %s36, 1
      %p263 = por %p261, %p262
      %p264 = scmp.ne.s32.totalorder %s255, %s256
      %p265 = scmp.eq.s32.totalorder %s36, 0
      %p266 = por %p264, %p265
      %p267 = scmp.ne.s32.totalorder %s255, %s256
      %p268 = scmp.eq.s32.totalorder %s37, 1
      %p269 = por %p267, %p268
      %p271 = scmp.ne.s32.totalorder %s256, %s270
      %p272 = scmp.eq.s32.totalorder %s37, 0
      %p273 = por %p271, %p272
      %s275 = sadd.s32 %s274, 1
      %p278 = scmp.eq.s32.totalorder %s31, 1
      %p279 = scmp.ne.s32.totalorder %s274, %s276
      %p280 = scmp.eq.s32.totalorder %s31, 0
      %p281 = por %p279, %p280
      %p282 = scmp.ne.s32.totalorder %s274, %s276
      %p283 = scmp.eq.s32.totalorder %s36, 1
      %p284 = por %p282, %p283
      %p285 = scmp.ne.s32.totalorder %s276, %s277
      %p286 = scmp.eq.s32.totalorder %s36, 0
      %p287 = por %p285, %p286
      %p288 = scmp.ne.s32.totalorder %s276, %s277
      %p289 = scmp.eq.s32.totalorder %s37, 1
      %p290 = por %p288, %p289
      %p292 = scmp.ne.s32.totalorder %s277, %s291
      %p293 = scmp.eq.s32.totalorder %s37, 0
      %p294 = por %p292, %p293
      %s296 = sadd.s32 %s295, 1
      %p299 = scmp.eq.s32.totalorder %s31, 1
      %p300 = scmp.ne.s32.totalorder %s295, %s297
      %p301 = scmp.eq.s32.totalorder %s31, 0
      %p302 = por %p300, %p301
      %p303 = scmp.ne.s32.totalorder %s295, %s297
      %p304 = scmp.eq.s32.totalorder %s36, 1
      %p305 = por %p303, %p304
      %p306 = scmp.ne.s32.totalorder %s297, %s298
      %p307 = scmp.eq.s32.totalorder %s36, 0
      %p308 = por %p306, %p307
      %p309 = scmp.ne.s32.totalorder %s297, %s298
      %p310 = scmp.eq.s32.totalorder %s37, 1
      %p311 = por %p309, %p310
      %p313 = scmp.ne.s32.totalorder %s298, %s312
      %p314 = scmp.eq.s32.totalorder %s37, 0
      %p315 = por %p313, %p314
      %s317 = sadd.s32 %s316, 1
      %p320 = scmp.eq.s32.totalorder %s31, 1
      %p321 = scmp.ne.s32.totalorder %s316, %s318
      %p322 = scmp.eq.s32.totalorder %s31, 0
      %p323 = por %p321, %p322
      %p324 = scmp.ne.s32.totalorder %s316, %s318
      %p325 = scmp.eq.s32.totalorder %s36, 1
      %p326 = por %p324, %p325
      %p327 = scmp.ne.s32.totalorder %s318, %s319
      %p328 = scmp.eq.s32.totalorder %s36, 0
      %p329 = por %p327, %p328
      %p330 = scmp.ne.s32.totalorder %s318, %s319
      %p331 = scmp.eq.s32.totalorder %s37, 1
      %p332 = por %p330, %p331
      %p334 = scmp.ne.s32.totalorder %s319, %s333
      %p335 = scmp.eq.s32.totalorder %s37, 0
      %p336 = por %p334, %p335
      %s338 = sadd.s32 %s337, 1
      %p341 = scmp.eq.s32.totalorder %s31, 1
      %p342 = scmp.ne.s32.totalorder %s337, %s339
      %p343 = scmp.eq.s32.totalorder %s31, 0
      %p344 = por %p342, %p343
      %p345 = scmp.ne.s32.totalorder %s337, %s339
      %p346 = scmp.eq.s32.totalorder %s36, 1
      %p347 = por %p345, %p346
      %p348 = scmp.ne.s32.totalorder %s339, %s340
      %p349 = scmp.eq.s32.totalorder %s36, 0
      %p350 = por %p348, %p349
      %p351 = scmp.ne.s32.totalorder %s339, %s340
      %p352 = scmp.eq.s32.totalorder %s37, 1
      %p353 = por %p351, %p352
      %p355 = scmp.ne.s32.totalorder %s340, %s354
      %p356 = scmp.eq.s32.totalorder %s37, 0
      %p357 = por %p355, %p356
      %s359 = sadd.s32 %s358, 1
      %p362 = scmp.eq.s32.totalorder %s31, 1
      %p363 = scmp.ne.s32.totalorder %s358, %s360
      %p364 = scmp.eq.s32.totalorder %s31, 0
      %p365 = por %p363, %p364
      %p366 = scmp.ne.s32.totalorder %s358, %s360
      %p367 = scmp.eq.s32.totalorder %s36, 1
      %p368 = por %p366, %p367
      %p369 = scmp.ne.s32.totalorder %s360, %s361
      %p370 = scmp.eq.s32.totalorder %s36, 0
      %p371 = por %p369, %p370
      %p372 = scmp.ne.s32.totalorder %s360, %s361
      %p373 = scmp.eq.s32.totalorder %s37, 1
      %p374 = por %p372, %p373
      %p376 = scmp.ne.s32.totalorder %s361, %s375
      %p377 = scmp.eq.s32.totalorder %s37, 0
      %p378 = por %p376, %p377
      %s380 = sadd.s32 %s379, 1
      %p383 = scmp.eq.s32.totalorder %s31, 1
      %p384 = scmp.ne.s32.totalorder %s379, %s381
      %p385 = scmp.eq.s32.totalorder %s31, 0
      %p386 = por %p384, %p385
      %p387 = scmp.ne.s32.totalorder %s379, %s381
      %p388 = scmp.eq.s32.totalorder %s36, 1
      %p389 = por %p387, %p388
      %p390 = scmp.ne.s32.totalorder %s381, %s382
      %p391 = scmp.eq.s32.totalorder %s36, 0
      %p392 = por %p390, %p391
      %p393 = scmp.ne.s32.totalorder %s381, %s382
      %p394 = scmp.eq.s32.totalorder %s37, 1
      %p395 = por %p393, %p394
      %p397 = scmp.ne.s32.totalorder %s382, %s396
      %p398 = scmp.eq.s32.totalorder %s37, 0
      %p399 = por %p397, %p398
      %s401 = sadd.s32 %s400, 1
      %p404 = scmp.eq.s32.totalorder %s31, 1
      %p405 = scmp.ne.s32.totalorder %s400, %s402
      %p406 = scmp.eq.s32.totalorder %s31, 0
      %p407 = por %p405, %p406
      %p408 = scmp.ne.s32.totalorder %s400, %s402
      %p409 = scmp.eq.s32.totalorder %s36, 1
      %p410 = por %p408, %p409
      %p411 = scmp.ne.s32.totalorder %s402, %s403
      %p412 = scmp.eq.s32.totalorder %s36, 0
      %p413 = por %p411, %p412
      %p414 = scmp.ne.s32.totalorder %s402, %s403
      %p415 = scmp.eq.s32.totalorder %s37, 1
      %p416 = por %p414, %p415
      %p418 = scmp.ne.s32.totalorder %s403, %s417
      %p419 = scmp.eq.s32.totalorder %s37, 0
      %p420 = por %p418, %p419
      %s422 = sadd.s32 %s421, 1
      %p425 = scmp.eq.s32.totalorder %s31, 1
      %p426 = scmp.ne.s32.totalorder %s421, %s423
      %p427 = scmp.eq.s32.totalorder %s31, 0
      %p428 = por %p426, %p427
      %p429 = scmp.ne.s32.totalorder %s421, %s423
      %p430 = scmp.eq.s32.totalorder %s36, 1
      %p431 = por %p429, %p430
      %p432 = scmp.ne.s32.totalorder %s423, %s424
      %p433 = scmp.eq.s32.totalorder %s36, 0
      %p434 = por %p432, %p433
      %p435 = scmp.ne.s32.totalorder %s423, %s424
      %p436 = scmp.eq.s32.totalorder %s37, 1
      %p437 = por %p435, %p436
      %p439 = scmp.ne.s32.totalorder %s424, %s438
      %p440 = scmp.eq.s32.totalorder %s37, 0
      %p441 = por %p439, %p440
      %s443 = sadd.s32 %s442, 1
      %p446 = scmp.eq.s32.totalorder %s31, 1
      %p447 = scmp.ne.s32.totalorder %s442, %s444
      %p448 = scmp.eq.s32.totalorder %s31, 0
      %p449 = por %p447, %p448
      %p450 = scmp.ne.s32.totalorder %s442, %s444
      %p451 = scmp.eq.s32.totalorder %s36, 1
      %p452 = por %p450, %p451
      %p453 = scmp.ne.s32.totalorder %s444, %s445
      %p454 = scmp.eq.s32.totalorder %s36, 0
      %p455 = por %p453, %p454
      %p456 = scmp.ne.s32.totalorder %s444, %s445
      %p457 = scmp.eq.s32.totalorder %s37, 1
      %p458 = por %p456, %p457
      %p460 = scmp.ne.s32.totalorder %s445, %s459
      %p461 = scmp.eq.s32.totalorder %s37, 0
      %p462 = por %p460, %p461
      %s464 = sadd.s32 %s463, 1
      %p467 = scmp.eq.s32.totalorder %s31, 1
      %p468 = scmp.ne.s32.totalorder %s463, %s465
      %p469 = scmp.eq.s32.totalorder %s31, 0
      %p470 = por %p468, %p469
      %p471 = scmp.ne.s32.totalorder %s463, %s465
      %p472 = scmp.eq.s32.totalorder %s36, 1
      %p473 = por %p471, %p472
      %p474 = scmp.ne.s32.totalorder %s465, %s466
      %p475 = scmp.eq.s32.totalorder %s36, 0
      %p476 = por %p474, %p475
      %p477 = scmp.ne.s32.totalorder %s465, %s466
      %p478 = scmp.eq.s32.totalorder %s37, 1
      %p479 = por %p477, %p478
      %p481 = scmp.ne.s32.totalorder %s466, %s480
      %p482 = scmp.eq.s32.totalorder %s37, 0
      %p483 = por %p481, %p482
      %s485 = sadd.s32 %s484, 1
      %p488 = scmp.eq.s32.totalorder %s31, 1
      %p489 = scmp.ne.s32.totalorder %s484, %s486
      %p490 = scmp.eq.s32.totalorder %s31, 0
      %p491 = por %p489, %p490
      %p492 = scmp.ne.s32.totalorder %s484, %s486
      %p493 = scmp.eq.s32.totalorder %s36, 1
      %p494 = por %p492, %p493
      %p495 = scmp.ne.s32.totalorder %s486, %s487
      %p496 = scmp.eq.s32.totalorder %s36, 0
      %p497 = por %p495, %p496
      %p498 = scmp.ne.s32.totalorder %s486, %s487
      %p499 = scmp.eq.s32.totalorder %s37, 1
      %p500 = por %p498, %p499
      %p502 = scmp.ne.s32.totalorder %s487, %s501
      %p503 = scmp.eq.s32.totalorder %s37, 0
      %p504 = por %p502, %p503
      %s506 = sadd.s32 %s505, 1
      %p509 = scmp.eq.s32.totalorder %s31, 1
      %p510 = scmp.ne.s32.totalorder %s505, %s507
      %p511 = scmp.eq.s32.totalorder %s31, 0
      %p512 = por %p510, %p511
      %p513 = scmp.ne.s32.totalorder %s505, %s507
      %p514 = scmp.eq.s32.totalorder %s36, 1
      %p515 = por %p513, %p514
      %p516 = scmp.ne.s32.totalorder %s507, %s508
      %p517 = scmp.eq.s32.totalorder %s36, 0
      %p518 = por %p516, %p517
      %p519 = scmp.ne.s32.totalorder %s507, %s508
      %p520 = scmp.eq.s32.totalorder %s37, 1
      %p521 = por %p519, %p520
      %p523 = scmp.ne.s32.totalorder %s508, %s522
      %p524 = scmp.eq.s32.totalorder %s37, 0
      %p525 = por %p523, %p524
      %s526 = ssub.s32 %s31, %s38
      %p527 = scmp.eq.s32.totalorder %s526, 0
      %s529 = sadd.s32 %s528, 1
      %s530 = scalar_select %p527, %s528, %s529
      %p533 = pneg %p527
      %p534 = scmp.eq.s32.totalorder %s31, 1
      %p535 = por %p533, %p534
      %p536 = scmp.ne.s32.totalorder %s528, %s531
      %p537 = scmp.eq.s32.totalorder %s31, 0
      %p538 = por %p536, %p537
      %p539 = scmp.ne.s32.totalorder %s528, %s531
      %p540 = scmp.eq.s32.totalorder %s36, 1
      %p541 = por %p539, %p540
      %p542 = scmp.ne.s32.totalorder %s531, %s532
      %p543 = scmp.eq.s32.totalorder %s36, 0
      %p544 = por %p542, %p543
      %p545 = scmp.ne.s32.totalorder %s531, %s532
      %p546 = scmp.eq.s32.totalorder %s37, 1
      %p547 = por %p545, %p546
      %p549 = scmp.ne.s32.totalorder %s532, %s548
      %p550 = scmp.eq.s32.totalorder %s37, 0
      %p551 = por %p549, %p550
      %p552 = scmp.le.s32.totalorder 1, %s31
      %p553 = scmp.lt.s32.totalorder %s31, 3
      %p554 = pnand %p552, %p553
      %p555 = pneg %p554
      // Predicated region
      $region9: #{_lambda_.1} parent=5 // pred_check
        _
      $region10: #{_lambda_.1} parent=5 // pred_check_branch
        %557 = sbr.rel (%p554) target = $region12
      $region11: #{_lambda_.1} parent=5 // pred_region
        %s558 = ssub.s32 %s31, 1
        // Predicated region
        $region13: #{_lambda_.1} parent=11 // pred_check
          %p559 = pneg %p182
        $region14: #{_lambda_.1} parent=11 // pred_check_branch
          %561 = sbr.rel (%p559) target = $region16
        $region15: #{_lambda_.1} parent=11 // pred_region
          _
        $region16: #{_lambda_.1} parent=11 // pred_fallthru
          _
        // Predicated region
        $region17: #{_lambda_.1} parent=11 // pred_check
          %p562 = pneg %p203
        $region18: #{_lambda_.1} parent=11 // pred_check_branch
          %564 = sbr.rel (%p562) target = $region20
        $region19: #{_lambda_.1} parent=11 // pred_region
          _
        $region20: #{_lambda_.1} parent=11 // pred_fallthru
          _
        // Predicated region
        $region21: #{_lambda_.1} parent=11 // pred_check
          %p565 = pneg %p224
        $region22: #{_lambda_.1} parent=11 // pred_check_branch
          %567 = sbr.rel (%p565) target = $region24
        $region23: #{_lambda_.1} parent=11 // pred_region
          _
        $region24: #{_lambda_.1} parent=11 // pred_fallthru
          _
        // Predicated region
        $region25: #{_lambda_.1} parent=11 // pred_check
          %p568 = pneg %p245
        $region26: #{_lambda_.1} parent=11 // pred_check_branch
          %570 = sbr.rel (%p568) target = $region28
        $region27: #{_lambda_.1} parent=11 // pred_region
          _
        $region28: #{_lambda_.1} parent=11 // pred_fallthru
          _
        // Predicated region
        $region29: #{_lambda_.1} parent=11 // pred_check
          %p571 = pneg %p266
        $region30: #{_lambda_.1} parent=11 // pred_check_branch
          %573 = sbr.rel (%p571) target = $region32
        $region31: #{_lambda_.1} parent=11 // pred_region
          _
        $region32: #{_lambda_.1} parent=11 // pred_fallthru
          _
        // Predicated region
        $region33: #{_lambda_.1} parent=11 // pred_check
          %p574 = pneg %p287
        $region34: #{_lambda_.1} parent=11 // pred_check_branch
          %576 = sbr.rel (%p574) target = $region36
        $region35: #{_lambda_.1} parent=11 // pred_region
          _
        $region36: #{_lambda_.1} parent=11 // pred_fallthru
          _
        // Predicated region
        $region37: #{_lambda_.1} parent=11 // pred_check
          %p577 = pneg %p308
        $region38: #{_lambda_.1} parent=11 // pred_check_branch
          %579 = sbr.rel (%p577) target = $region40
        $region39: #{_lambda_.1} parent=11 // pred_region
          _
        $region40: #{_lambda_.1} parent=11 // pred_fallthru
          _
        // Predicated region
        $region41: #{_lambda_.1} parent=11 // pred_check
          %p580 = pneg %p329
        $region42: #{_lambda_.1} parent=11 // pred_check_branch
          %582 = sbr.rel (%p580) target = $region44
        $region43: #{_lambda_.1} parent=11 // pred_region
          _
        $region44: #{_lambda_.1} parent=11 // pred_fallthru
          _
        // Predicated region
        $region45: #{_lambda_.1} parent=11 // pred_check
          %p583 = pneg %p350
        $region46: #{_lambda_.1} parent=11 // pred_check_branch
          %585 = sbr.rel (%p583) target = $region48
        $region47: #{_lambda_.1} parent=11 // pred_region
          _
        $region48: #{_lambda_.1} parent=11 // pred_fallthru
          _
        // Predicated region
        $region49: #{_lambda_.1} parent=11 // pred_check
          %p586 = pneg %p371
        $region50: #{_lambda_.1} parent=11 // pred_check_branch
          %588 = sbr.rel (%p586) target = $region52
        $region51: #{_lambda_.1} parent=11 // pred_region
          _
        $region52: #{_lambda_.1} parent=11 // pred_fallthru
          _
        // Predicated region
        $region53: #{_lambda_.1} parent=11 // pred_check
          %p589 = pneg %p392
        $region54: #{_lambda_.1} parent=11 // pred_check_branch
          %591 = sbr.rel (%p589) target = $region56
        $region55: #{_lambda_.1} parent=11 // pred_region
          _
        $region56: #{_lambda_.1} parent=11 // pred_fallthru
          _
        // Predicated region
        $region57: #{_lambda_.1} parent=11 // pred_check
          %p592 = pneg %p413
        $region58: #{_lambda_.1} parent=11 // pred_check_branch
          %594 = sbr.rel (%p592) target = $region60
        $region59: #{_lambda_.1} parent=11 // pred_region
          _
        $region60: #{_lambda_.1} parent=11 // pred_fallthru
          _
        // Predicated region
        $region61: #{_lambda_.1} parent=11 // pred_check
          %p595 = pneg %p434
        $region62: #{_lambda_.1} parent=11 // pred_check_branch
          %597 = sbr.rel (%p595) target = $region64
        $region63: #{_lambda_.1} parent=11 // pred_region
          _
        $region64: #{_lambda_.1} parent=11 // pred_fallthru
          _
        // Predicated region
        $region65: #{_lambda_.1} parent=11 // pred_check
          %p598 = pneg %p455
        $region66: #{_lambda_.1} parent=11 // pred_check_branch
          %600 = sbr.rel (%p598) target = $region68
        $region67: #{_lambda_.1} parent=11 // pred_region
          _
        $region68: #{_lambda_.1} parent=11 // pred_fallthru
          _
        // Predicated region
        $region69: #{_lambda_.1} parent=11 // pred_check
          %p601 = pneg %p476
        $region70: #{_lambda_.1} parent=11 // pred_check_branch
          %603 = sbr.rel (%p601) target = $region72
        $region71: #{_lambda_.1} parent=11 // pred_region
          _
        $region72: #{_lambda_.1} parent=11 // pred_fallthru
          _
        // Predicated region
        $region73: #{_lambda_.1} parent=11 // pred_check
          %p604 = pneg %p497
        $region74: #{_lambda_.1} parent=11 // pred_check_branch
          %606 = sbr.rel (%p604) target = $region76
        $region75: #{_lambda_.1} parent=11 // pred_region
          _
        $region76: #{_lambda_.1} parent=11 // pred_fallthru
          _
        // Predicated region
        $region77: #{_lambda_.1} parent=11 // pred_check
          %p607 = pneg %p518
        $region78: #{_lambda_.1} parent=11 // pred_check_branch
          %609 = sbr.rel (%p607) target = $region80
        $region79: #{_lambda_.1} parent=11 // pred_region
          _
        $region80: #{_lambda_.1} parent=11 // pred_fallthru
          _
      $region12: #{_lambda_.1} parent=5 // pred_fallthru
        _
      %p610 = scmp.lt.s32.totalorder %s31, 2
      // Predicated region
      $region81: #{_lambda_.1} parent=5 // pred_check
        %p611 = pneg %p610
      $region82: #{_lambda_.1} parent=5 // pred_check_branch
        %613 = sbr.rel (%p611) target = $region84
      $region83: #{_lambda_.1} parent=5 // pred_region
        // Predicated region
        $region85: #{_lambda_.1} parent=83 // pred_check
          %p614 = pneg %p51
        $region86: #{_lambda_.1} parent=83 // pred_check_branch
          %616 = sbr.rel (%p614) target = $region88
        $region87: #{_lambda_.1} parent=83 // pred_region
          %s617 = smul.u32 16, %s31
          %p618 = scmp.lt.s32.totalorder %s617, 31
          %s619 = scalar_select %p618, %s617, 31
          %s620 = smul.addr %s619, 8
          %s621 = scalar_lea.vmem %s0, %s620
          %s622 = smul.u32 16, %s31
        $region88: #{_lambda_.1} parent=83 // pred_fallthru
          _
        // Predicated region
        $region89: #{_lambda_.1} parent=83 // pred_check
          %p623 = pneg %p77
        $region90: #{_lambda_.1} parent=83 // pred_check_branch
          %625 = sbr.rel (%p623) target = $region92
        $region91: #{_lambda_.1} parent=83 // pred_region
          %s626 = smul.u32 16, %s31
          %p627 = scmp.lt.s32.totalorder %s626, 31
          %s628 = scalar_select %p627, %s626, 31
          %s629 = smul.addr %s628, 8
          %s630 = scalar_lea.vmem %s1, %s629
          %s631 = smul.u32 16, %s31
        $region92: #{_lambda_.1} parent=83 // pred_fallthru
          _
        // Predicated region
        $region93: #{_lambda_.1} parent=83 // pred_check
          %p632 = pneg %p103
        $region94: #{_lambda_.1} parent=83 // pred_check_branch
          %634 = sbr.rel (%p632) target = $region96
        $region95: #{_lambda_.1} parent=83 // pred_region
          %s635 = smul.u32 16, %s31
          %p636 = scmp.lt.s32.totalorder %s635, 31
          %s637 = scalar_select %p636, %s635, 31
          %s638 = smul.addr %s637, 2
          %s639 = smul.addr %s638, 8
          %s640 = scalar_lea.vmem %s2, %s639
          %s641 = smul.u32 16, %s31
        $region96: #{_lambda_.1} parent=83 // pred_fallthru
          _
        // Predicated region
        $region97: #{_lambda_.1} parent=83 // pred_check
          %p642 = pneg %p129
        $region98: #{_lambda_.1} parent=83 // pred_check_branch
          %644 = sbr.rel (%p642) target = $region100
        $region99: #{_lambda_.1} parent=83 // pred_region
          %s645 = smul.u32 32, %s31
          %p646 = scmp.lt.s32.totalorder %s645, 63
          %s647 = scalar_select %p646, %s645, 63
          %s648 = smul.addr %s647, 8
          %s649 = scalar_lea.vmem %s3, %s648
          %s650 = smul.u32 32, %s31
        $region100: #{_lambda_.1} parent=83 // pred_fallthru
          _
        // Predicated region
        $region101: #{_lambda_.1} parent=83 // pred_check
          %p651 = pneg %p155
        $region102: #{_lambda_.1} parent=83 // pred_check_branch
          %653 = sbr.rel (%p651) target = $region104
        $region103: #{_lambda_.1} parent=83 // pred_region
          %s654 = smul.u32 2, %s31
          %p655 = scmp.lt.s32.totalorder %s654, 3
          %s656 = scalar_select %p655, %s654, 3
          %s657 = smul.addr %s656, 8
          %s658 = scalar_lea.vmem %s4, %s657
          %s659 = smul.u32 2, %s31
        $region104: #{_lambda_.1} parent=83 // pred_fallthru
          _
      $region84: #{_lambda_.1} parent=5 // pred_fallthru
        _
      %p660 = scmp.le.s32.totalorder 1, %s31
      %p661 = scmp.lt.s32.totalorder %s31, 3
      %p662 = pnand %p660, %p661
      %p663 = pneg %p662
      // Predicated region
      $region105: #{_lambda_.1} parent=5 // pred_check
        _
      $region106: #{_lambda_.1} parent=5 // pred_check_branch
        %665 = sbr.rel (%p662) target = $region108
      $region107: #{_lambda_.1} parent=5 // pred_region
        %s666 = ssub.s32 %s31, 1
        %s667 = smul.u32 16, %s36
        %p668 = scmp.lt.s32.totalorder %s667, 31
        %s669 = scalar_select %p668, %s667, 31
        %s670 = smul.addr %s669, 8
        %s671 = scalar_lea.vmem %s0, %s670
        %p672 = pneg %p57
        %p673 = pneg %p54
        %s674 = smul.u32 16, %s36
        %p675 = scmp.lt.s32.totalorder %s674, 31
        %s676 = scalar_select %p675, %s674, 31
        %s677 = smul.addr %s676, 8
        %s678 = scalar_lea.vmem %s1, %s677
        %p679 = pneg %p83
        %p680 = pneg %p80
        %s681 = smul.u32 16, %s36
        %p682 = scmp.lt.s32.totalorder %s681, 31
        %s683 = scalar_select %p682, %s681, 31
        %s684 = smul.addr %s683, 2
        %s685 = smul.addr %s684, 8
        %s686 = scalar_lea.vmem %s2, %s685
        %p687 = pneg %p109
        %p688 = pneg %p106
        %s689 = smul.u32 32, %s36
        %p690 = scmp.lt.s32.totalorder %s689, 63
        %s691 = scalar_select %p690, %s689, 63
        %s692 = smul.addr %s691, 8
        %s693 = scalar_lea.vmem %s3, %s692
        %p694 = pneg %p135
        %p695 = pneg %p132
        %s696 = smul.u32 2, %s36
        %p697 = scmp.lt.s32.totalorder %s696, 3
        %s698 = scalar_select %p697, %s696, 3
        %s699 = smul.addr %s698, 8
        %s700 = scalar_lea.vmem %s4, %s699
        %p701 = pneg %p161
        %p702 = pneg %p158
        %p703 = pneg %p182
        %p704 = pneg %p179
        %p705 = pneg %p203
        %p706 = pneg %p200
        %p707 = pneg %p224
        %p708 = pneg %p221
        %p709 = pneg %p245
        %p710 = pneg %p242
        %p711 = pneg %p266
        %p712 = pneg %p263
        %p713 = pneg %p287
        %p714 = pneg %p284
        %p715 = pneg %p308
        %p716 = pneg %p305
        %p717 = pneg %p329
        %p718 = pneg %p326
        %p719 = pneg %p350
        %p720 = pneg %p347
        %p721 = pneg %p371
        %p722 = pneg %p368
        %p723 = pneg %p392
        %p724 = pneg %p389
        %p725 = pneg %p413
        %p726 = pneg %p410
        %p727 = pneg %p434
        %p728 = pneg %p431
        %p729 = pneg %p455
        %p730 = pneg %p452
        %p731 = pneg %p476
        %p732 = pneg %p473
        %p733 = pneg %p497
        %p734 = pneg %p494
        %p735 = pneg %p518
        %p736 = pneg %p515
        %p737 = pneg %p544
        %p738 = pneg %p541
        %s739 = sand.u32 %s531, 1
        %s740 = scalar_lea.sflag [#allocation3], %s739
        %s741 = sand.u32 %s531, 1
        %s742 = smul.addr %s741, 16
        %s743 = scalar_lea.vmem [#allocation2], %s742
        %s744 = smul.u32 16, %s36
        %p745 = scmp.lt.s32.totalorder %s744, 31
        %s746 = scalar_select %p745, %s744, 31
        %s747 = smul.addr %s746, 8
        %s748 = scalar_lea.vmem %s0, %s747
        %s749 = smul.u32 16, %s36
        %s750 = smul.u32 16, %s36
        %p751 = scmp.lt.s32.totalorder %s750, 31
        %s752 = scalar_select %p751, %s750, 31
        %s753 = smul.addr %s752, 8
        %s754 = scalar_lea.vmem %s1, %s753
        %s755 = smul.u32 16, %s36
        %s756 = smul.u32 16, %s36
        %p757 = scmp.lt.s32.totalorder %s756, 31
        %s758 = scalar_select %p757, %s756, 31
        %s759 = smul.addr %s758, 2
        %s760 = smul.addr %s759, 8
        %s761 = scalar_lea.vmem %s2, %s760
        %s762 = smul.u32 16, %s36
        %s763 = smul.u32 32, %s36
        %p764 = scmp.lt.s32.totalorder %s763, 63
        %s765 = scalar_select %p764, %s763, 63
        %s766 = smul.addr %s765, 8
        %s767 = scalar_lea.vmem %s3, %s766
        %s768 = smul.u32 32, %s36
        %s769 = smul.u32 2, %s36
        %p770 = scmp.lt.s32.totalorder %s769, 3
        %s771 = scalar_select %p770, %s769, 3
        %s772 = smul.addr %s771, 8
        %s773 = scalar_lea.vmem %s4, %s772
        %s774 = smul.u32 2, %s36
        %s775 = smul.u32 2, %s36
        %v776 = vld [vmem:[%s773] sm:$0xff]
        %v777 = vld [vmem:[%s773 + $0x8] sm:$0xff]
        %v778 = vld [vmem:[%s748] sm:$0xff]
        %v779 = vld [vmem:[%s748 + $0x8] sm:$0xff]
        %v780 = vld [vmem:[%s748 + $0x10] sm:$0xff]
        %v781 = vld [vmem:[%s748 + $0x18] sm:$0xff]
        %v782 = vld [vmem:[%s748 + $0x20] sm:$0xff]
        %v783 = vld [vmem:[%s748 + $0x28] sm:$0xff]
        %v784 = vld [vmem:[%s748 + $0x30] sm:$0xff]
        %v785 = vld [vmem:[%s748 + $0x38] sm:$0xff]
        %v786 = vld [vmem:[%s748 + $0x40] sm:$0xff]
        %v787 = vld [vmem:[%s748 + $0x48] sm:$0xff]
        %v788 = vld [vmem:[%s748 + $0x50] sm:$0xff]
        %v789 = vld [vmem:[%s748 + $0x58] sm:$0xff]
        %v790 = vld [vmem:[%s748 + $0x60] sm:$0xff]
        %v791 = vld [vmem:[%s748 + $0x68] sm:$0xff]
        %v792 = vld [vmem:[%s748 + $0x70] sm:$0xff]
        %v793 = vld [vmem:[%s748 + $0x78] sm:$0xff]
        %v796 = vrot.slane %v776, 1
        %v797 = vrot.slane %v776, 2
        %v798 = vrot.slane %v776, 3
        %v799 = vrot.slane %v776, 4
        %v800 = vrot.slane %v776, 5
        %v801 = vrot.slane %v776, 6
        %v802 = vrot.slane %v776, 7
        %v803 = vrot.slane %v777, 1
        %v804 = vrot.slane %v777, 2
        %v805 = vrot.slane %v777, 3
        %v806 = vrot.slane %v777, 4
        %v807 = vrot.slane %v777, 5
        %v808 = vrot.slane %v777, 6
        %v809 = vrot.slane %v777, 7
        %v810 = vperm.slane %v776, 0
        %v811 = vperm.slane %v796, 0
        %v812 = vperm.slane %v797, 0
        %v813 = vperm.slane %v798, 0
        %v814 = vperm.slane %v799, 0
        %v815 = vperm.slane %v800, 0
        %v816 = vperm.slane %v801, 0
        %v817 = vperm.slane %v802, 0
        %v818 = vperm.slane %v777, 0
        %v819 = vperm.slane %v803, 0
        %v820 = vperm.slane %v804, 0
        %v821 = vperm.slane %v805, 0
        %v822 = vperm.slane %v806, 0
        %v823 = vperm.slane %v807, 0
        %v824 = vperm.slane %v808, 0
        %v825 = vperm.slane %v809, 0
        %v842 = vsub.f32 %v778, %v810
        %v843 = vsub.f32 %v779, %v811
        %v844 = vsub.f32 %v780, %v812
        %v845 = vsub.f32 %v781, %v813
        %v846 = vsub.f32 %v782, %v814
        %v847 = vsub.f32 %v783, %v815
        %v848 = vsub.f32 %v784, %v816
        %v849 = vsub.f32 %v785, %v817
        %v850 = vsub.f32 %v786, %v818
        %v851 = vsub.f32 %v787, %v819
        %v852 = vsub.f32 %v788, %v820
        %v853 = vsub.f32 %v789, %v821
        %v854 = vsub.f32 %v790, %v822
        %v855 = vsub.f32 %v791, %v823
        %v856 = vsub.f32 %v792, %v824
        %v857 = vsub.f32 %v793, %v825
        %v858 = vld [vmem:[%s5] sm:$0x7]
        %v859 = vld [vmem:[%s754] sm:$0xff]
        %v860 = vld [vmem:[%s754 + $0x8] sm:$0xff]
        %v861 = vld [vmem:[%s754 + $0x10] sm:$0xff]
        %v862 = vld [vmem:[%s754 + $0x18] sm:$0xff]
        %v863 = vld [vmem:[%s754 + $0x20] sm:$0xff]
        %v864 = vld [vmem:[%s754 + $0x28] sm:$0xff]
        %v865 = vld [vmem:[%s754 + $0x30] sm:$0xff]
        %v866 = vld [vmem:[%s754 + $0x38] sm:$0xff]
        %v867 = vld [vmem:[%s754 + $0x40] sm:$0xff]
        %v868 = vld [vmem:[%s754 + $0x48] sm:$0xff]
        %v869 = vld [vmem:[%s754 + $0x50] sm:$0xff]
        %v870 = vld [vmem:[%s754 + $0x58] sm:$0xff]
        %v871 = vld [vmem:[%s754 + $0x60] sm:$0xff]
        %v872 = vld [vmem:[%s754 + $0x68] sm:$0xff]
        %v873 = vld [vmem:[%s754 + $0x70] sm:$0xff]
        %v874 = vld [vmem:[%s754 + $0x78] sm:$0xff]
        %v875 = vld [vmem:[%s6] sm:$0xf]
        %vm876 = vcmask 31744
        %v878 = vsel %vm876, %v859, 0
        %v881 = vsel %vm876, %v860, 0
        %v884 = vsel %vm876, %v861, 0
        %v887 = vsel %vm876, %v862, 0
        %v890 = vsel %vm876, %v863, 0
        %v893 = vsel %vm876, %v864, 0
        %v896 = vsel %vm876, %v865, 0
        %v899 = vsel %vm876, %v866, 0
        %v902 = vsel %vm876, %v867, 0
        %v905 = vsel %vm876, %v868, 0
        %v908 = vsel %vm876, %v869, 0
        %v911 = vsel %vm876, %v870, 0
        %v914 = vsel %vm876, %v871, 0
        %v917 = vsel %vm876, %v872, 0
        %v920 = vsel %vm876, %v873, 0
        %v923 = vsel %vm876, %v874, 0
        %vm925 = vcmask 1043456
        %v927 = vsel %vm925, %v875, 0
        %929 = vmatpush.msra.mxu0 0.0
        %930 = vmatpush.msra.mxu0 0.0
        %931 = vmatpush.msra.mxu0 0.0
        %932 = vmatpush.msra.mxu0 0.0
        %933 = vmatpush.msra.mxu0 0.0
        %934 = vmatpush.msra.mxu0 0.0
        %935 = vmatpush.msra.mxu0 0.0
        %936 = vmatpush.msra.mxu0 0.0
        %937 = vmatpush.msra.mxu0 0.0
        %938 = vmatpush.msra.mxu0 0.0
        %939 = vmatpush.msra.mxu0 0.0
        %940 = vmatpush.msra.mxu0 0.0
        %941 = vmatpush.msra.mxu0 0.0
        %942 = vmatpush.msra.mxu0 0.0
        %943 = vmatpush.msra.mxu0 0.0
        %944 = vmatpush.msra.mxu0 %v927
        %945 = vmatmul.f32.gmra.mxu0 %v878
        %v946 = vpop.f32.mrf.mxu0
        %v947 = vadd.f32 0.0, %v946
        %948 = vmatmul.f32.gmra.mxu0 %v881
        %v949 = vpop.f32.mrf.mxu0
        %v950 = vadd.f32 0.0, %v949
        %951 = vmatmul.f32.gmra.mxu0 %v884
        %v952 = vpop.f32.mrf.mxu0
        %v953 = vadd.f32 0.0, %v952
        %954 = vmatmul.f32.gmra.mxu0 %v887
        %v955 = vpop.f32.mrf.mxu0
        %v956 = vadd.f32 0.0, %v955
        %957 = vmatmul.f32.gmra.mxu0 %v890
        %v958 = vpop.f32.mrf.mxu0
        %v959 = vadd.f32 0.0, %v958
        %960 = vmatmul.f32.gmra.mxu0 %v893
        %v961 = vpop.f32.mrf.mxu0
        %v962 = vadd.f32 0.0, %v961
        %963 = vmatmul.f32.gmra.mxu0 %v896
        %v964 = vpop.f32.mrf.mxu0
        %v965 = vadd.f32 0.0, %v964
        %966 = vmatmul.f32.gmra.mxu0 %v899
        %v967 = vpop.f32.mrf.mxu0
        %v968 = vadd.f32 0.0, %v967
        %969 = vmatmul.f32.gmra.mxu0 %v902
        %v970 = vpop.f32.mrf.mxu0
        %v971 = vadd.f32 0.0, %v970
        %972 = vmatmul.f32.gmra.mxu0 %v905
        %v973 = vpop.f32.mrf.mxu0
        %v974 = vadd.f32 0.0, %v973
        %975 = vmatmul.f32.gmra.mxu0 %v908
        %v976 = vpop.f32.mrf.mxu0
        %v977 = vadd.f32 0.0, %v976
        %978 = vmatmul.f32.gmra.mxu0 %v911
        %v979 = vpop.f32.mrf.mxu0
        %v980 = vadd.f32 0.0, %v979
        %981 = vmatmul.f32.gmra.mxu0 %v914
        %v982 = vpop.f32.mrf.mxu0
        %v983 = vadd.f32 0.0, %v982
        %984 = vmatmul.f32.gmra.mxu0 %v917
        %v985 = vpop.f32.mrf.mxu0
        %v986 = vadd.f32 0.0, %v985
        %987 = vmatmul.f32.gmra.mxu0 %v920
        %v988 = vpop.f32.mrf.mxu0
        %v989 = vadd.f32 0.0, %v988
        %990 = vmatmul.f32.gmra.mxu0 %v923
        %v991 = vpop.f32.mrf.mxu0
        %v992 = vadd.f32 0.0, %v991
        %993 = vdwg.mxu0
        %vm994 = vcmask 23552
        %v996 = vsel %vm994, %v842, 0
        %v999 = vsel %vm994, %v843, 0
        %v1002 = vsel %vm994, %v844, 0
        %v1005 = vsel %vm994, %v845, 0
        %v1008 = vsel %vm994, %v846, 0
        %v1011 = vsel %vm994, %v847, 0
        %v1014 = vsel %vm994, %v848, 0
        %v1017 = vsel %vm994, %v849, 0
        %v1020 = vsel %vm994, %v850, 0
        %v1023 = vsel %vm994, %v851, 0
        %v1026 = vsel %vm994, %v852, 0
        %v1029 = vsel %vm994, %v853, 0
        %v1032 = vsel %vm994, %v854, 0
        %v1035 = vsel %vm994, %v855, 0
        %v1038 = vsel %vm994, %v856, 0
        %v1041 = vsel %vm994, %v857, 0
        %vm1043 = vcmask 1042432
        %v1045 = vsel %vm1043, %v858, 0
        %1047 = vmatpush.msra.mxu0 0.0
        %1048 = vmatpush.msra.mxu0 0.0
        %1049 = vmatpush.msra.mxu0 0.0
        %1050 = vmatpush.msra.mxu0 0.0
        %1051 = vmatpush.msra.mxu0 0.0
        %1052 = vmatpush.msra.mxu0 0.0
        %1053 = vmatpush.msra.mxu0 0.0
        %1054 = vmatpush.msra.mxu0 0.0
        %1055 = vmatpush.msra.mxu0 0.0
        %1056 = vmatpush.msra.mxu0 0.0
        %1057 = vmatpush.msra.mxu0 0.0
        %1058 = vmatpush.msra.mxu0 0.0
        %1059 = vmatpush.msra.mxu0 0.0
        %1060 = vmatpush.msra.mxu0 0.0
        %1061 = vmatpush.msra.mxu0 0.0
        %1062 = vmatpush.msra.mxu0 %v1045
        %1063 = vmatmul.f32.gmra.mxu0 %v996
        %v1064 = vpop.f32.mrf.mxu0
        %v1065 = vadd.f32 %v947, %v1064
        %1066 = vmatmul.f32.gmra.mxu0 %v999
        %v1067 = vpop.f32.mrf.mxu0
        %v1068 = vadd.f32 %v950, %v1067
        %1069 = vmatmul.f32.gmra.mxu0 %v1002
        %v1070 = vpop.f32.mrf.mxu0
        %v1071 = vadd.f32 %v953, %v1070
        %1072 = vmatmul.f32.gmra.mxu0 %v1005
        %v1073 = vpop.f32.mrf.mxu0
        %v1074 = vadd.f32 %v956, %v1073
        %1075 = vmatmul.f32.gmra.mxu0 %v1008
        %v1076 = vpop.f32.mrf.mxu0
        %v1077 = vadd.f32 %v959, %v1076
        %1078 = vmatmul.f32.gmra.mxu0 %v1011
        %v1079 = vpop.f32.mrf.mxu0
        %v1080 = vadd.f32 %v962, %v1079
        %1081 = vmatmul.f32.gmra.mxu0 %v1014
        %v1082 = vpop.f32.mrf.mxu0
        %v1083 = vadd.f32 %v965, %v1082
        %1084 = vmatmul.f32.gmra.mxu0 %v1017
        %v1085 = vpop.f32.mrf.mxu0
        %v1086 = vadd.f32 %v968, %v1085
        %1087 = vmatmul.f32.gmra.mxu0 %v1020
        %v1088 = vpop.f32.mrf.mxu0
        %v1089 = vadd.f32 %v971, %v1088
        %1090 = vmatmul.f32.gmra.mxu0 %v1023
        %v1091 = vpop.f32.mrf.mxu0
        %v1092 = vadd.f32 %v974, %v1091
        %1093 = vmatmul.f32.gmra.mxu0 %v1026
        %v1094 = vpop.f32.mrf.mxu0
        %v1095 = vadd.f32 %v977, %v1094
        %1096 = vmatmul.f32.gmra.mxu0 %v1029
        %v1097 = vpop.f32.mrf.mxu0
        %v1098 = vadd.f32 %v980, %v1097
        %1099 = vmatmul.f32.gmra.mxu0 %v1032
        %v1100 = vpop.f32.mrf.mxu0
        %v1101 = vadd.f32 %v983, %v1100
        %1102 = vmatmul.f32.gmra.mxu0 %v1035
        %v1103 = vpop.f32.mrf.mxu0
        %v1104 = vadd.f32 %v986, %v1103
        %1105 = vmatmul.f32.gmra.mxu0 %v1038
        %v1106 = vpop.f32.mrf.mxu0
        %v1107 = vadd.f32 %v989, %v1106
        %1108 = vmatmul.f32.gmra.mxu0 %v1041
        %v1109 = vpop.f32.mrf.mxu0
        %v1110 = vadd.f32 %v992, %v1109
        %1111 = vdwg.mxu0
        %v1112 = vld [vmem:[%s7] sm:$0x1]
        %v1114 = vperm.slane %v1112, 0
        %v1116 = vadd.f32 %v1065, %v1114
        %v1117 = vadd.f32 %v1068, %v1114
        %v1118 = vadd.f32 %v1071, %v1114
        %v1119 = vadd.f32 %v1074, %v1114
        %v1120 = vadd.f32 %v1077, %v1114
        %v1121 = vadd.f32 %v1080, %v1114
        %v1122 = vadd.f32 %v1083, %v1114
        %v1123 = vadd.f32 %v1086, %v1114
        %v1124 = vadd.f32 %v1089, %v1114
        %v1125 = vadd.f32 %v1092, %v1114
        %v1126 = vadd.f32 %v1095, %v1114
        %v1127 = vadd.f32 %v1098, %v1114
        %v1128 = vadd.f32 %v1101, %v1114
        %v1129 = vadd.f32 %v1104, %v1114
        %v1130 = vadd.f32 %v1107, %v1114
        %v1131 = vadd.f32 %v1110, %v1114
        %v1132 = vmax.f32 %v1116, 0.0
        %v1133 = vmax.f32 %v1117, 0.0
        %v1134 = vmax.f32 %v1118, 0.0
        %v1135 = vmax.f32 %v1119, 0.0
        %v1136 = vmax.f32 %v1120, 0.0
        %v1137 = vmax.f32 %v1121, 0.0
        %v1138 = vmax.f32 %v1122, 0.0
        %v1139 = vmax.f32 %v1123, 0.0
        %v1140 = vmax.f32 %v1124, 0.0
        %v1141 = vmax.f32 %v1125, 0.0
        %v1142 = vmax.f32 %v1126, 0.0
        %v1143 = vmax.f32 %v1127, 0.0
        %v1144 = vmax.f32 %v1128, 0.0
        %v1145 = vmax.f32 %v1129, 0.0
        %v1146 = vmax.f32 %v1130, 0.0
        %v1147 = vmax.f32 %v1131, 0.0
        %v1148 = vld [vmem:[%s8] sm:$0xff]
        %v1149 = vld [vmem:[%s8 + $0x8] sm:$0xff]
        %v1150 = vld [vmem:[%s9] sm:$0x1]
        %v1152 = vperm.slane %v1150, 0
        %vm1154 = vcmask 130048
        %v1156 = vsel %vm1154, %v1132, 0
        %v1159 = vsel %vm1154, %v1133, 0
        %v1162 = vsel %vm1154, %v1134, 0
        %v1165 = vsel %vm1154, %v1135, 0
        %v1168 = vsel %vm1154, %v1136, 0
        %v1171 = vsel %vm1154, %v1137, 0
        %v1174 = vsel %vm1154, %v1138, 0
        %v1177 = vsel %vm1154, %v1139, 0
        %v1180 = vsel %vm1154, %v1140, 0
        %v1183 = vsel %vm1154, %v1141, 0
        %v1186 = vsel %vm1154, %v1142, 0
        %v1189 = vsel %vm1154, %v1143, 0
        %v1192 = vsel %vm1154, %v1144, 0
        %v1195 = vsel %vm1154, %v1145, 0
        %v1198 = vsel %vm1154, %v1146, 0
        %v1201 = vsel %vm1154, %v1147, 0
        %1203 = vmatpush.msra.mxu0 0.0
        %1204 = vmatpush.msra.mxu0 0.0
        %1205 = vmatpush.msra.mxu0 0.0
        %1206 = vmatpush.msra.mxu0 0.0
        %1207 = vmatpush.msra.mxu0 0.0
        %1208 = vmatpush.msra.mxu0 0.0
        %1209 = vmatpush.msra.mxu0 0.0
        %1210 = vmatpush.msra.mxu0 0.0
        %1211 = vmatpush.msra.mxu0 0.0
        %1212 = vmatpush.msra.mxu0 0.0
        %1213 = vmatpush.msra.mxu0 0.0
        %1214 = vmatpush.msra.mxu0 0.0
        %1215 = vmatpush.msra.mxu0 0.0
        %1216 = vmatpush.msra.mxu0 0.0
        %1217 = vmatpush.msra.mxu0 %v1149
        %1218 = vmatpush.msra.mxu0 %v1148
        %1219 = vmatmul.f32.gmra.mxu0 %v1156
        %v1220 = vpop.f32.mrf.mxu0
        %v1221 = vadd.f32 %v1152, %v1220
        %1222 = vmatmul.f32.gmra.mxu0 %v1159
        %v1223 = vpop.f32.mrf.mxu0
        %v1224 = vadd.f32 %v1152, %v1223
        %1225 = vmatmul.f32.gmra.mxu0 %v1162
        %v1226 = vpop.f32.mrf.mxu0
        %v1227 = vadd.f32 %v1152, %v1226
        %1228 = vmatmul.f32.gmra.mxu0 %v1165
        %v1229 = vpop.f32.mrf.mxu0
        %v1230 = vadd.f32 %v1152, %v1229
        %1231 = vmatmul.f32.gmra.mxu0 %v1168
        %v1232 = vpop.f32.mrf.mxu0
        %v1233 = vadd.f32 %v1152, %v1232
        %1234 = vmatmul.f32.gmra.mxu0 %v1171
        %v1235 = vpop.f32.mrf.mxu0
        %v1236 = vadd.f32 %v1152, %v1235
        %1237 = vmatmul.f32.gmra.mxu0 %v1174
        %v1238 = vpop.f32.mrf.mxu0
        %v1239 = vadd.f32 %v1152, %v1238
        %1240 = vmatmul.f32.gmra.mxu0 %v1177
        %v1241 = vpop.f32.mrf.mxu0
        %v1242 = vadd.f32 %v1152, %v1241
        %1243 = vmatmul.f32.gmra.mxu0 %v1180
        %v1244 = vpop.f32.mrf.mxu0
        %v1245 = vadd.f32 %v1152, %v1244
        %1246 = vmatmul.f32.gmra.mxu0 %v1183
        %v1247 = vpop.f32.mrf.mxu0
        %v1248 = vadd.f32 %v1152, %v1247
        %1249 = vmatmul.f32.gmra.mxu0 %v1186
        %v1250 = vpop.f32.mrf.mxu0
        %v1251 = vadd.f32 %v1152, %v1250
        %1252 = vmatmul.f32.gmra.mxu0 %v1189
        %v1253 = vpop.f32.mrf.mxu0
        %v1254 = vadd.f32 %v1152, %v1253
        %1255 = vmatmul.f32.gmra.mxu0 %v1192
        %v1256 = vpop.f32.mrf.mxu0
        %v1257 = vadd.f32 %v1152, %v1256
        %1258 = vmatmul.f32.gmra.mxu0 %v1195
        %v1259 = vpop.f32.mrf.mxu0
        %v1260 = vadd.f32 %v1152, %v1259
        %1261 = vmatmul.f32.gmra.mxu0 %v1198
        %v1262 = vpop.f32.mrf.mxu0
        %v1263 = vadd.f32 %v1152, %v1262
        %1264 = vmatmul.f32.gmra.mxu0 %v1201
        %v1265 = vpop.f32.mrf.mxu0
        %v1266 = vadd.f32 %v1152, %v1265
        %1267 = vdwg.mxu0
        %v1268 = vmax.f32 %v1221, 0.0
        %v1269 = vmax.f32 %v1224, 0.0
        %v1270 = vmax.f32 %v1227, 0.0
        %v1271 = vmax.f32 %v1230, 0.0
        %v1272 = vmax.f32 %v1233, 0.0
        %v1273 = vmax.f32 %v1236, 0.0
        %v1274 = vmax.f32 %v1239, 0.0
        %v1275 = vmax.f32 %v1242, 0.0
        %v1276 = vmax.f32 %v1245, 0.0
        %v1277 = vmax.f32 %v1248, 0.0
        %v1278 = vmax.f32 %v1251, 0.0
        %v1279 = vmax.f32 %v1254, 0.0
        %v1280 = vmax.f32 %v1257, 0.0
        %v1281 = vmax.f32 %v1260, 0.0
        %v1282 = vmax.f32 %v1263, 0.0
        %v1283 = vmax.f32 %v1266, 0.0
        %v1284 = vld [vmem:[%s10] sm:$0xff]
        %v1285 = vld [vmem:[%s10 + $0x8] sm:$0xff]
        %v1286 = vld [vmem:[%s11] sm:$0x1]
        %v1288 = vperm.slane %v1286, 0
        %v1291 = vsel %vm1154, %v1268, 0
        %v1294 = vsel %vm1154, %v1269, 0
        %v1297 = vsel %vm1154, %v1270, 0
        %v1300 = vsel %vm1154, %v1271, 0
        %v1303 = vsel %vm1154, %v1272, 0
        %v1306 = vsel %vm1154, %v1273, 0
        %v1309 = vsel %vm1154, %v1274, 0
        %v1312 = vsel %vm1154, %v1275, 0
        %v1315 = vsel %vm1154, %v1276, 0
        %v1318 = vsel %vm1154, %v1277, 0
        %v1321 = vsel %vm1154, %v1278, 0
        %v1324 = vsel %vm1154, %v1279, 0
        %v1327 = vsel %vm1154, %v1280, 0
        %v1330 = vsel %vm1154, %v1281, 0
        %v1333 = vsel %vm1154, %v1282, 0
        %v1336 = vsel %vm1154, %v1283, 0
        %1338 = vmatpush.msra.mxu0 0.0
        %1339 = vmatpush.msra.mxu0 0.0
        %1340 = vmatpush.msra.mxu0 0.0
        %1341 = vmatpush.msra.mxu0 0.0
        %1342 = vmatpush.msra.mxu0 0.0
        %1343 = vmatpush.msra.mxu0 0.0
        %1344 = vmatpush.msra.mxu0 0.0
        %1345 = vmatpush.msra.mxu0 0.0
        %1346 = vmatpush.msra.mxu0 0.0
        %1347 = vmatpush.msra.mxu0 0.0
        %1348 = vmatpush.msra.mxu0 0.0
        %1349 = vmatpush.msra.mxu0 0.0
        %1350 = vmatpush.msra.mxu0 0.0
        %1351 = vmatpush.msra.mxu0 0.0
        %1352 = vmatpush.msra.mxu0 %v1285
        %1353 = vmatpush.msra.mxu0 %v1284
        %1354 = vmatmul.f32.gmra.mxu0 %v1291
        %v1355 = vpop.f32.mrf.mxu0
        %v1356 = vadd.f32 %v1288, %v1355
        %1357 = vmatmul.f32.gmra.mxu0 %v1294
        %v1358 = vpop.f32.mrf.mxu0
        %v1359 = vadd.f32 %v1288, %v1358
        %1360 = vmatmul.f32.gmra.mxu0 %v1297
        %v1361 = vpop.f32.mrf.mxu0
        %v1362 = vadd.f32 %v1288, %v1361
        %1363 = vmatmul.f32.gmra.mxu0 %v1300
        %v1364 = vpop.f32.mrf.mxu0
        %v1365 = vadd.f32 %v1288, %v1364
        %1366 = vmatmul.f32.gmra.mxu0 %v1303
        %v1367 = vpop.f32.mrf.mxu0
        %v1368 = vadd.f32 %v1288, %v1367
        %1369 = vmatmul.f32.gmra.mxu0 %v1306
        %v1370 = vpop.f32.mrf.mxu0
        %v1371 = vadd.f32 %v1288, %v1370
        %1372 = vmatmul.f32.gmra.mxu0 %v1309
        %v1373 = vpop.f32.mrf.mxu0
        %v1374 = vadd.f32 %v1288, %v1373
        %1375 = vmatmul.f32.gmra.mxu0 %v1312
        %v1376 = vpop.f32.mrf.mxu0
        %v1377 = vadd.f32 %v1288, %v1376
        %1378 = vmatmul.f32.gmra.mxu0 %v1315
        %v1379 = vpop.f32.mrf.mxu0
        %v1380 = vadd.f32 %v1288, %v1379
        %1381 = vmatmul.f32.gmra.mxu0 %v1318
        %v1382 = vpop.f32.mrf.mxu0
        %v1383 = vadd.f32 %v1288, %v1382
        %1384 = vmatmul.f32.gmra.mxu0 %v1321
        %v1385 = vpop.f32.mrf.mxu0
        %v1386 = vadd.f32 %v1288, %v1385
        %1387 = vmatmul.f32.gmra.mxu0 %v1324
        %v1388 = vpop.f32.mrf.mxu0
        %v1389 = vadd.f32 %v1288, %v1388
        %1390 = vmatmul.f32.gmra.mxu0 %v1327
        %v1391 = vpop.f32.mrf.mxu0
        %v1392 = vadd.f32 %v1288, %v1391
        %1393 = vmatmul.f32.gmra.mxu0 %v1330
        %v1394 = vpop.f32.mrf.mxu0
        %v1395 = vadd.f32 %v1288, %v1394
        %1396 = vmatmul.f32.gmra.mxu0 %v1333
        %v1397 = vpop.f32.mrf.mxu0
        %v1398 = vadd.f32 %v1288, %v1397
        %1399 = vmatmul.f32.gmra.mxu0 %v1336
        %v1400 = vpop.f32.mrf.mxu0
        %v1401 = vadd.f32 %v1288, %v1400
        %1402 = vdwg.mxu0
        %v1403 = vmax.f32 %v1356, 0.0
        %v1404 = vmax.f32 %v1359, 0.0
        %v1405 = vmax.f32 %v1362, 0.0
        %v1406 = vmax.f32 %v1365, 0.0
        %v1407 = vmax.f32 %v1368, 0.0
        %v1408 = vmax.f32 %v1371, 0.0
        %v1409 = vmax.f32 %v1374, 0.0
        %v1410 = vmax.f32 %v1377, 0.0
        %v1411 = vmax.f32 %v1380, 0.0
        %v1412 = vmax.f32 %v1383, 0.0
        %v1413 = vmax.f32 %v1386, 0.0
        %v1414 = vmax.f32 %v1389, 0.0
        %v1415 = vmax.f32 %v1392, 0.0
        %v1416 = vmax.f32 %v1395, 0.0
        %v1417 = vmax.f32 %v1398, 0.0
        %v1418 = vmax.f32 %v1401, 0.0
        %vm1419 = vcmask 261120
        %v1420 = vsel %vm1419, %v1403, -inf
        %v1421 = vrot.slane %v1420, 4
        %v1422 = vmax.f32 %v1420, %v1421
        %v1423 = vrot.slane %v1422, 2
        %v1424 = vmax.f32 %v1422, %v1423
        %v1425 = vrot.slane %v1424, 1
        %v1426 = vmax.f32 %v1424, %v1425
        %v1427 = vsel %vm1419, %v1404, -inf
        %v1428 = vrot.slane %v1427, 4
        %v1429 = vmax.f32 %v1427, %v1428
        %v1430 = vrot.slane %v1429, 2
        %v1431 = vmax.f32 %v1429, %v1430
        %v1432 = vrot.slane %v1431, 1
        %v1433 = vmax.f32 %v1431, %v1432
        %v1434 = vsel %vm1419, %v1405, -inf
        %v1435 = vrot.slane %v1434, 4
        %v1436 = vmax.f32 %v1434, %v1435
        %v1437 = vrot.slane %v1436, 2
        %v1438 = vmax.f32 %v1436, %v1437
        %v1439 = vrot.slane %v1438, 1
        %v1440 = vmax.f32 %v1438, %v1439
        %v1441 = vsel %vm1419, %v1406, -inf
        %v1442 = vrot.slane %v1441, 4
        %v1443 = vmax.f32 %v1441, %v1442
        %v1444 = vrot.slane %v1443, 2
        %v1445 = vmax.f32 %v1443, %v1444
        %v1446 = vrot.slane %v1445, 1
        %v1447 = vmax.f32 %v1445, %v1446
        %v1448 = vsel %vm1419, %v1407, -inf
        %v1449 = vrot.slane %v1448, 4
        %v1450 = vmax.f32 %v1448, %v1449
        %v1451 = vrot.slane %v1450, 2
        %v1452 = vmax.f32 %v1450, %v1451
        %v1453 = vrot.slane %v1452, 1
        %v1454 = vmax.f32 %v1452, %v1453
        %v1455 = vsel %vm1419, %v1408, -inf
        %v1456 = vrot.slane %v1455, 4
        %v1457 = vmax.f32 %v1455, %v1456
        %v1458 = vrot.slane %v1457, 2
        %v1459 = vmax.f32 %v1457, %v1458
        %v1460 = vrot.slane %v1459, 1
        %v1461 = vmax.f32 %v1459, %v1460
        %v1462 = vsel %vm1419, %v1409, -inf
        %v1463 = vrot.slane %v1462, 4
        %v1464 = vmax.f32 %v1462, %v1463
        %v1465 = vrot.slane %v1464, 2
        %v1466 = vmax.f32 %v1464, %v1465
        %v1467 = vrot.slane %v1466, 1
        %v1468 = vmax.f32 %v1466, %v1467
        %v1469 = vsel %vm1419, %v1410, -inf
        %v1470 = vrot.slane %v1469, 4
        %v1471 = vmax.f32 %v1469, %v1470
        %v1472 = vrot.slane %v1471, 2
        %v1473 = vmax.f32 %v1471, %v1472
        %v1474 = vrot.slane %v1473, 1
        %v1475 = vmax.f32 %v1473, %v1474
        %v1476 = vsel %vm1419, %v1411, -inf
        %v1477 = vrot.slane %v1476, 4
        %v1478 = vmax.f32 %v1476, %v1477
        %v1479 = vrot.slane %v1478, 2
        %v1480 = vmax.f32 %v1478, %v1479
        %v1481 = vrot.slane %v1480, 1
        %v1482 = vmax.f32 %v1480, %v1481
        %v1483 = vsel %vm1419, %v1412, -inf
        %v1484 = vrot.slane %v1483, 4
        %v1485 = vmax.f32 %v1483, %v1484
        %v1486 = vrot.slane %v1485, 2
        %v1487 = vmax.f32 %v1485, %v1486
        %v1488 = vrot.slane %v1487, 1
        %v1489 = vmax.f32 %v1487, %v1488
        %v1490 = vsel %vm1419, %v1413, -inf
        %v1491 = vrot.slane %v1490, 4
        %v1492 = vmax.f32 %v1490, %v1491
        %v1493 = vrot.slane %v1492, 2
        %v1494 = vmax.f32 %v1492, %v1493
        %v1495 = vrot.slane %v1494, 1
        %v1496 = vmax.f32 %v1494, %v1495
        %v1497 = vsel %vm1419, %v1414, -inf
        %v1498 = vrot.slane %v1497, 4
        %v1499 = vmax.f32 %v1497, %v1498
        %v1500 = vrot.slane %v1499, 2
        %v1501 = vmax.f32 %v1499, %v1500
        %v1502 = vrot.slane %v1501, 1
        %v1503 = vmax.f32 %v1501, %v1502
        %v1504 = vsel %vm1419, %v1415, -inf
        %v1505 = vrot.slane %v1504, 4
        %v1506 = vmax.f32 %v1504, %v1505
        %v1507 = vrot.slane %v1506, 2
        %v1508 = vmax.f32 %v1506, %v1507
        %v1509 = vrot.slane %v1508, 1
        %v1510 = vmax.f32 %v1508, %v1509
        %v1511 = vsel %vm1419, %v1416, -inf
        %v1512 = vrot.slane %v1511, 4
        %v1513 = vmax.f32 %v1511, %v1512
        %v1514 = vrot.slane %v1513, 2
        %v1515 = vmax.f32 %v1513, %v1514
        %v1516 = vrot.slane %v1515, 1
        %v1517 = vmax.f32 %v1515, %v1516
        %v1518 = vsel %vm1419, %v1417, -inf
        %v1519 = vrot.slane %v1518, 4
        %v1520 = vmax.f32 %v1518, %v1519
        %v1521 = vrot.slane %v1520, 2
        %v1522 = vmax.f32 %v1520, %v1521
        %v1523 = vrot.slane %v1522, 1
        %v1524 = vmax.f32 %v1522, %v1523
        %v1525 = vsel %vm1419, %v1418, -inf
        %v1526 = vrot.slane %v1525, 4
        %v1527 = vmax.f32 %v1525, %v1526
        %v1528 = vrot.slane %v1527, 2
        %v1529 = vmax.f32 %v1527, %v1528
        %v1530 = vrot.slane %v1529, 1
        %v1531 = vmax.f32 %v1529, %v1530
        %v1532 = vld [vmem:[%s19] sm:$0xff]
        %v1533 = vld [vmem:[%s19 + $0x8] sm:$0xff]
        %v1534 = vld [vmem:[%s19 + $0x10] sm:$0xff]
        %v1535 = vld [vmem:[%s19 + $0x18] sm:$0xff]
        %v1536 = vld [vmem:[%s761] sm:$0xff]
        %v1537 = vld [vmem:[%s761 + $0x8] sm:$0xff]
        %v1538 = vld [vmem:[%s761 + $0x10] sm:$0xff]
        %v1539 = vld [vmem:[%s761 + $0x18] sm:$0xff]
        %v1540 = vld [vmem:[%s761 + $0x20] sm:$0xff]
        %v1541 = vld [vmem:[%s761 + $0x28] sm:$0xff]
        %v1542 = vld [vmem:[%s761 + $0x30] sm:$0xff]
        %v1543 = vld [vmem:[%s761 + $0x38] sm:$0xff]
        %v1544 = vld [vmem:[%s761 + $0x40] sm:$0xff]
        %v1545 = vld [vmem:[%s761 + $0x48] sm:$0xff]
        %v1546 = vld [vmem:[%s761 + $0x50] sm:$0xff]
        %v1547 = vld [vmem:[%s761 + $0x58] sm:$0xff]
        %v1548 = vld [vmem:[%s761 + $0x60] sm:$0xff]
        %v1549 = vld [vmem:[%s761 + $0x68] sm:$0xff]
        %v1550 = vld [vmem:[%s761 + $0x70] sm:$0xff]
        %v1551 = vld [vmem:[%s761 + $0x78] sm:$0xff]
        %v1552 = vld [vmem:[%s761 + $0x80] sm:$0xff]
        %v1553 = vld [vmem:[%s761 + $0x88] sm:$0xff]
        %v1554 = vld [vmem:[%s761 + $0x90] sm:$0xff]
        %v1555 = vld [vmem:[%s761 + $0x98] sm:$0xff]
        %v1556 = vld [vmem:[%s761 + $0xa0] sm:$0xff]
        %v1557 = vld [vmem:[%s761 + $0xa8] sm:$0xff]
        %v1558 = vld [vmem:[%s761 + $0xb0] sm:$0xff]
        %v1559 = vld [vmem:[%s761 + $0xb8] sm:$0xff]
        %v1560 = vld [vmem:[%s761 + $0xc0] sm:$0xff]
        %v1561 = vld [vmem:[%s761 + $0xc8] sm:$0xff]
        %v1562 = vld [vmem:[%s761 + $0xd0] sm:$0xff]
        %v1563 = vld [vmem:[%s761 + $0xd8] sm:$0xff]
        %v1564 = vld [vmem:[%s761 + $0xe0] sm:$0xff]
        %v1565 = vld [vmem:[%s761 + $0xe8] sm:$0xff]
        %v1566 = vld [vmem:[%s761 + $0xf0] sm:$0xff]
        %v1567 = vld [vmem:[%s761 + $0xf8] sm:$0xff]
        %v1568 = vsub.f32 %v1536, %v810
        %v1569 = vsub.f32 %v1537, %v810
        %v1570 = vsub.f32 %v1538, %v811
        %v1571 = vsub.f32 %v1539, %v811
        %v1572 = vsub.f32 %v1540, %v812
        %v1573 = vsub.f32 %v1541, %v812
        %v1574 = vsub.f32 %v1542, %v813
        %v1575 = vsub.f32 %v1543, %v813
        %v1576 = vsub.f32 %v1544, %v814
        %v1577 = vsub.f32 %v1545, %v814
        %v1578 = vsub.f32 %v1546, %v815
        %v1579 = vsub.f32 %v1547, %v815
        %v1580 = vsub.f32 %v1548, %v816
        %v1581 = vsub.f32 %v1549, %v816
        %v1582 = vsub.f32 %v1550, %v817
        %v1583 = vsub.f32 %v1551, %v817
        %v1584 = vsub.f32 %v1552, %v818
        %v1585 = vsub.f32 %v1553, %v818
        %v1586 = vsub.f32 %v1554, %v819
        %v1587 = vsub.f32 %v1555, %v819
        %v1588 = vsub.f32 %v1556, %v820
        %v1589 = vsub.f32 %v1557, %v820
        %v1590 = vsub.f32 %v1558, %v821
        %v1591 = vsub.f32 %v1559, %v821
        %v1592 = vsub.f32 %v1560, %v822
        %v1593 = vsub.f32 %v1561, %v822
        %v1594 = vsub.f32 %v1562, %v823
        %v1595 = vsub.f32 %v1563, %v823
        %v1596 = vsub.f32 %v1564, %v824
        %v1597 = vsub.f32 %v1565, %v824
        %v1598 = vsub.f32 %v1566, %v825
        %v1599 = vsub.f32 %v1567, %v825
        %v1600 = vld [vmem:[%s12] sm:$0x7]
        %v1601 = vld [vmem:[%s767] sm:$0xff]
        %v1602 = vld [vmem:[%s767 + $0x8] sm:$0xff]
        %v1603 = vld [vmem:[%s767 + $0x10] sm:$0xff]
        %v1604 = vld [vmem:[%s767 + $0x18] sm:$0xff]
        %v1605 = vld [vmem:[%s767 + $0x20] sm:$0xff]
        %v1606 = vld [vmem:[%s767 + $0x28] sm:$0xff]
        %v1607 = vld [vmem:[%s767 + $0x30] sm:$0xff]
        %v1608 = vld [vmem:[%s767 + $0x38] sm:$0xff]
        %v1609 = vld [vmem:[%s767 + $0x40] sm:$0xff]
        %v1610 = vld [vmem:[%s767 + $0x48] sm:$0xff]
        %v1611 = vld [vmem:[%s767 + $0x50] sm:$0xff]
        %v1612 = vld [vmem:[%s767 + $0x58] sm:$0xff]
        %v1613 = vld [vmem:[%s767 + $0x60] sm:$0xff]
        %v1614 = vld [vmem:[%s767 + $0x68] sm:$0xff]
        %v1615 = vld [vmem:[%s767 + $0x70] sm:$0xff]
        %v1616 = vld [vmem:[%s767 + $0x78] sm:$0xff]
        %v1617 = vld [vmem:[%s767 + $0x80] sm:$0xff]
        %v1618 = vld [vmem:[%s767 + $0x88] sm:$0xff]
        %v1619 = vld [vmem:[%s767 + $0x90] sm:$0xff]
        %v1620 = vld [vmem:[%s767 + $0x98] sm:$0xff]
        %v1621 = vld [vmem:[%s767 + $0xa0] sm:$0xff]
        %v1622 = vld [vmem:[%s767 + $0xa8] sm:$0xff]
        %v1623 = vld [vmem:[%s767 + $0xb0] sm:$0xff]
        %v1624 = vld [vmem:[%s767 + $0xb8] sm:$0xff]
        %v1625 = vld [vmem:[%s767 + $0xc0] sm:$0xff]
        %v1626 = vld [vmem:[%s767 + $0xc8] sm:$0xff]
        %v1627 = vld [vmem:[%s767 + $0xd0] sm:$0xff]
        %v1628 = vld [vmem:[%s767 + $0xd8] sm:$0xff]
        %v1629 = vld [vmem:[%s767 + $0xe0] sm:$0xff]
        %v1630 = vld [vmem:[%s767 + $0xe8] sm:$0xff]
        %v1631 = vld [vmem:[%s767 + $0xf0] sm:$0xff]
        %v1632 = vld [vmem:[%s767 + $0xf8] sm:$0xff]
        %v1633 = vld [vmem:[%s13] sm:$0xf]
        %v1635 = vsel %vm876, %v1601, 0
        %v1638 = vsel %vm876, %v1602, 0
        %v1641 = vsel %vm876, %v1603, 0
        %v1644 = vsel %vm876, %v1604, 0
        %v1647 = vsel %vm876, %v1605, 0
        %v1650 = vsel %vm876, %v1606, 0
        %v1653 = vsel %vm876, %v1607, 0
        %v1656 = vsel %vm876, %v1608, 0
        %v1659 = vsel %vm876, %v1609, 0
        %v1662 = vsel %vm876, %v1610, 0
        %v1665 = vsel %vm876, %v1611, 0
        %v1668 = vsel %vm876, %v1612, 0
        %v1671 = vsel %vm876, %v1613, 0
        %v1674 = vsel %vm876, %v1614, 0
        %v1677 = vsel %vm876, %v1615, 0
        %v1680 = vsel %vm876, %v1616, 0
        %v1683 = vsel %vm876, %v1617, 0
        %v1686 = vsel %vm876, %v1618, 0
        %v1689 = vsel %vm876, %v1619, 0
        %v1692 = vsel %vm876, %v1620, 0
        %v1695 = vsel %vm876, %v1621, 0
        %v1698 = vsel %vm876, %v1622, 0
        %v1701 = vsel %vm876, %v1623, 0
        %v1704 = vsel %vm876, %v1624, 0
        %v1707 = vsel %vm876, %v1625, 0
        %v1710 = vsel %vm876, %v1626, 0
        %v1713 = vsel %vm876, %v1627, 0
        %v1716 = vsel %vm876, %v1628, 0
        %v1719 = vsel %vm876, %v1629, 0
        %v1722 = vsel %vm876, %v1630, 0
        %v1725 = vsel %vm876, %v1631, 0
        %v1728 = vsel %vm876, %v1632, 0
        %v1731 = vsel %vm925, %v1633, 0
        %1733 = vmatpush.msra.mxu0 0.0
        %1734 = vmatpush.msra.mxu0 0.0
        %1735 = vmatpush.msra.mxu0 0.0
        %1736 = vmatpush.msra.mxu0 0.0
        %1737 = vmatpush.msra.mxu0 0.0
        %1738 = vmatpush.msra.mxu0 0.0
        %1739 = vmatpush.msra.mxu0 0.0
        %1740 = vmatpush.msra.mxu0 0.0
        %1741 = vmatpush.msra.mxu0 0.0
        %1742 = vmatpush.msra.mxu0 0.0
        %1743 = vmatpush.msra.mxu0 0.0
        %1744 = vmatpush.msra.mxu0 0.0
        %1745 = vmatpush.msra.mxu0 0.0
        %1746 = vmatpush.msra.mxu0 0.0
        %1747 = vmatpush.msra.mxu0 0.0
        %1748 = vmatpush.msra.mxu0 %v1731
        %1749 = vmatmul.f32.gmra.mxu0 %v1635
        %v1750 = vpop.f32.mrf.mxu0
        %v1751 = vadd.f32 0.0, %v1750
        %1752 = vmatmul.f32.gmra.mxu0 %v1638
        %v1753 = vpop.f32.mrf.mxu0
        %v1754 = vadd.f32 0.0, %v1753
        %1755 = vmatmul.f32.gmra.mxu0 %v1641
        %v1756 = vpop.f32.mrf.mxu0
        %v1757 = vadd.f32 0.0, %v1756
        %1758 = vmatmul.f32.gmra.mxu0 %v1644
        %v1759 = vpop.f32.mrf.mxu0
        %v1760 = vadd.f32 0.0, %v1759
        %1761 = vmatmul.f32.gmra.mxu0 %v1647
        %v1762 = vpop.f32.mrf.mxu0
        %v1763 = vadd.f32 0.0, %v1762
        %1764 = vmatmul.f32.gmra.mxu0 %v1650
        %v1765 = vpop.f32.mrf.mxu0
        %v1766 = vadd.f32 0.0, %v1765
        %1767 = vmatmul.f32.gmra.mxu0 %v1653
        %v1768 = vpop.f32.mrf.mxu0
        %v1769 = vadd.f32 0.0, %v1768
        %1770 = vmatmul.f32.gmra.mxu0 %v1656
        %v1771 = vpop.f32.mrf.mxu0
        %v1772 = vadd.f32 0.0, %v1771
        %1773 = vmatmul.f32.gmra.mxu0 %v1659
        %v1774 = vpop.f32.mrf.mxu0
        %v1775 = vadd.f32 0.0, %v1774
        %1776 = vmatmul.f32.gmra.mxu0 %v1662
        %v1777 = vpop.f32.mrf.mxu0
        %v1778 = vadd.f32 0.0, %v1777
        %1779 = vmatmul.f32.gmra.mxu0 %v1665
        %v1780 = vpop.f32.mrf.mxu0
        %v1781 = vadd.f32 0.0, %v1780
        %1782 = vmatmul.f32.gmra.mxu0 %v1668
        %v1783 = vpop.f32.mrf.mxu0
        %v1784 = vadd.f32 0.0, %v1783
        %1785 = vmatmul.f32.gmra.mxu0 %v1671
        %v1786 = vpop.f32.mrf.mxu0
        %v1787 = vadd.f32 0.0, %v1786
        %1788 = vmatmul.f32.gmra.mxu0 %v1674
        %v1789 = vpop.f32.mrf.mxu0
        %v1790 = vadd.f32 0.0, %v1789
        %1791 = vmatmul.f32.gmra.mxu0 %v1677
        %v1792 = vpop.f32.mrf.mxu0
        %v1793 = vadd.f32 0.0, %v1792
        %1794 = vmatmul.f32.gmra.mxu0 %v1680
        %v1795 = vpop.f32.mrf.mxu0
        %v1796 = vadd.f32 0.0, %v1795
        %1797 = vmatmul.f32.gmra.mxu0 %v1683
        %v1798 = vpop.f32.mrf.mxu0
        %v1799 = vadd.f32 0.0, %v1798
        %1800 = vmatmul.f32.gmra.mxu0 %v1686
        %v1801 = vpop.f32.mrf.mxu0
        %v1802 = vadd.f32 0.0, %v1801
        %1803 = vmatmul.f32.gmra.mxu0 %v1689
        %v1804 = vpop.f32.mrf.mxu0
        %v1805 = vadd.f32 0.0, %v1804
        %1806 = vmatmul.f32.gmra.mxu0 %v1692
        %v1807 = vpop.f32.mrf.mxu0
        %v1808 = vadd.f32 0.0, %v1807
        %1809 = vmatmul.f32.gmra.mxu0 %v1695
        %v1810 = vpop.f32.mrf.mxu0
        %v1811 = vadd.f32 0.0, %v1810
        %1812 = vmatmul.f32.gmra.mxu0 %v1698
        %v1813 = vpop.f32.mrf.mxu0
        %v1814 = vadd.f32 0.0, %v1813
        %1815 = vmatmul.f32.gmra.mxu0 %v1701
        %v1816 = vpop.f32.mrf.mxu0
        %v1817 = vadd.f32 0.0, %v1816
        %1818 = vmatmul.f32.gmra.mxu0 %v1704
        %v1819 = vpop.f32.mrf.mxu0
        %v1820 = vadd.f32 0.0, %v1819
        %1821 = vmatmul.f32.gmra.mxu0 %v1707
        %v1822 = vpop.f32.mrf.mxu0
        %v1823 = vadd.f32 0.0, %v1822
        %1824 = vmatmul.f32.gmra.mxu0 %v1710
        %v1825 = vpop.f32.mrf.mxu0
        %v1826 = vadd.f32 0.0, %v1825
        %1827 = vmatmul.f32.gmra.mxu0 %v1713
        %v1828 = vpop.f32.mrf.mxu0
        %v1829 = vadd.f32 0.0, %v1828
        %1830 = vmatmul.f32.gmra.mxu0 %v1716
        %v1831 = vpop.f32.mrf.mxu0
        %v1832 = vadd.f32 0.0, %v1831
        %1833 = vmatmul.f32.gmra.mxu0 %v1719
        %v1834 = vpop.f32.mrf.mxu0
        %v1835 = vadd.f32 0.0, %v1834
        %1836 = vmatmul.f32.gmra.mxu0 %v1722
        %v1837 = vpop.f32.mrf.mxu0
        %v1838 = vadd.f32 0.0, %v1837
        %1839 = vmatmul.f32.gmra.mxu0 %v1725
        %v1840 = vpop.f32.mrf.mxu0
        %v1841 = vadd.f32 0.0, %v1840
        %1842 = vmatmul.f32.gmra.mxu0 %v1728
        %v1843 = vpop.f32.mrf.mxu0
        %v1844 = vadd.f32 0.0, %v1843
        %1845 = vdwg.mxu0
        %v1847 = vsel %vm994, %v1568, 0
        %v1850 = vsel %vm994, %v1569, 0
        %v1853 = vsel %vm994, %v1570, 0
        %v1856 = vsel %vm994, %v1571, 0
        %v1859 = vsel %vm994, %v1572, 0
        %v1862 = vsel %vm994, %v1573, 0
        %v1865 = vsel %vm994, %v1574, 0
        %v1868 = vsel %vm994, %v1575, 0
        %v1871 = vsel %vm994, %v1576, 0
        %v1874 = vsel %vm994, %v1577, 0
        %v1877 = vsel %vm994, %v1578, 0
        %v1880 = vsel %vm994, %v1579, 0
        %v1883 = vsel %vm994, %v1580, 0
        %v1886 = vsel %vm994, %v1581, 0
        %v1889 = vsel %vm994, %v1582, 0
        %v1892 = vsel %vm994, %v1583, 0
        %v1895 = vsel %vm994, %v1584, 0
        %v1898 = vsel %vm994, %v1585, 0
        %v1901 = vsel %vm994, %v1586, 0
        %v1904 = vsel %vm994, %v1587, 0
        %v1907 = vsel %vm994, %v1588, 0
        %v1910 = vsel %vm994, %v1589, 0
        %v1913 = vsel %vm994, %v1590, 0
        %v1916 = vsel %vm994, %v1591, 0
        %v1919 = vsel %vm994, %v1592, 0
        %v1922 = vsel %vm994, %v1593, 0
        %v1925 = vsel %vm994, %v1594, 0
        %v1928 = vsel %vm994, %v1595, 0
        %v1931 = vsel %vm994, %v1596, 0
        %v1934 = vsel %vm994, %v1597, 0
        %v1937 = vsel %vm994, %v1598, 0
        %v1940 = vsel %vm994, %v1599, 0
        %v1943 = vsel %vm1043, %v1600, 0
        %1945 = vmatpush.msra.mxu0 0.0
        %1946 = vmatpush.msra.mxu0 0.0
        %1947 = vmatpush.msra.mxu0 0.0
        %1948 = vmatpush.msra.mxu0 0.0
        %1949 = vmatpush.msra.mxu0 0.0
        %1950 = vmatpush.msra.mxu0 0.0
        %1951 = vmatpush.msra.mxu0 0.0
        %1952 = vmatpush.msra.mxu0 0.0
        %1953 = vmatpush.msra.mxu0 0.0
        %1954 = vmatpush.msra.mxu0 0.0
        %1955 = vmatpush.msra.mxu0 0.0
        %1956 = vmatpush.msra.mxu0 0.0
        %1957 = vmatpush.msra.mxu0 0.0
        %1958 = vmatpush.msra.mxu0 0.0
        %1959 = vmatpush.msra.mxu0 0.0
        %1960 = vmatpush.msra.mxu0 %v1943
        %1961 = vmatmul.f32.gmra.mxu0 %v1847
        %v1962 = vpop.f32.mrf.mxu0
        %v1963 = vadd.f32 %v1751, %v1962
        %1964 = vmatmul.f32.gmra.mxu0 %v1850
        %v1965 = vpop.f32.mrf.mxu0
        %v1966 = vadd.f32 %v1754, %v1965
        %1967 = vmatmul.f32.gmra.mxu0 %v1853
        %v1968 = vpop.f32.mrf.mxu0
        %v1969 = vadd.f32 %v1757, %v1968
        %1970 = vmatmul.f32.gmra.mxu0 %v1856
        %v1971 = vpop.f32.mrf.mxu0
        %v1972 = vadd.f32 %v1760, %v1971
        %1973 = vmatmul.f32.gmra.mxu0 %v1859
        %v1974 = vpop.f32.mrf.mxu0
        %v1975 = vadd.f32 %v1763, %v1974
        %1976 = vmatmul.f32.gmra.mxu0 %v1862
        %v1977 = vpop.f32.mrf.mxu0
        %v1978 = vadd.f32 %v1766, %v1977
        %1979 = vmatmul.f32.gmra.mxu0 %v1865
        %v1980 = vpop.f32.mrf.mxu0
        %v1981 = vadd.f32 %v1769, %v1980
        %1982 = vmatmul.f32.gmra.mxu0 %v1868
        %v1983 = vpop.f32.mrf.mxu0
        %v1984 = vadd.f32 %v1772, %v1983
        %1985 = vmatmul.f32.gmra.mxu0 %v1871
        %v1986 = vpop.f32.mrf.mxu0
        %v1987 = vadd.f32 %v1775, %v1986
        %1988 = vmatmul.f32.gmra.mxu0 %v1874
        %v1989 = vpop.f32.mrf.mxu0
        %v1990 = vadd.f32 %v1778, %v1989
        %1991 = vmatmul.f32.gmra.mxu0 %v1877
        %v1992 = vpop.f32.mrf.mxu0
        %v1993 = vadd.f32 %v1781, %v1992
        %1994 = vmatmul.f32.gmra.mxu0 %v1880
        %v1995 = vpop.f32.mrf.mxu0
        %v1996 = vadd.f32 %v1784, %v1995
        %1997 = vmatmul.f32.gmra.mxu0 %v1883
        %v1998 = vpop.f32.mrf.mxu0
        %v1999 = vadd.f32 %v1787, %v1998
        %2000 = vmatmul.f32.gmra.mxu0 %v1886
        %v2001 = vpop.f32.mrf.mxu0
        %v2002 = vadd.f32 %v1790, %v2001
        %2003 = vmatmul.f32.gmra.mxu0 %v1889
        %v2004 = vpop.f32.mrf.mxu0
        %v2005 = vadd.f32 %v1793, %v2004
        %2006 = vmatmul.f32.gmra.mxu0 %v1892
        %v2007 = vpop.f32.mrf.mxu0
        %v2008 = vadd.f32 %v1796, %v2007
        %2009 = vmatmul.f32.gmra.mxu0 %v1895
        %v2010 = vpop.f32.mrf.mxu0
        %v2011 = vadd.f32 %v1799, %v2010
        %2012 = vmatmul.f32.gmra.mxu0 %v1898
        %v2013 = vpop.f32.mrf.mxu0
        %v2014 = vadd.f32 %v1802, %v2013
        %2015 = vmatmul.f32.gmra.mxu0 %v1901
        %v2016 = vpop.f32.mrf.mxu0
        %v2017 = vadd.f32 %v1805, %v2016
        %2018 = vmatmul.f32.gmra.mxu0 %v1904
        %v2019 = vpop.f32.mrf.mxu0
        %v2020 = vadd.f32 %v1808, %v2019
        %2021 = vmatmul.f32.gmra.mxu0 %v1907
        %v2022 = vpop.f32.mrf.mxu0
        %v2023 = vadd.f32 %v1811, %v2022
        %2024 = vmatmul.f32.gmra.mxu0 %v1910
        %v2025 = vpop.f32.mrf.mxu0
        %v2026 = vadd.f32 %v1814, %v2025
        %2027 = vmatmul.f32.gmra.mxu0 %v1913
        %v2028 = vpop.f32.mrf.mxu0
        %v2029 = vadd.f32 %v1817, %v2028
        %2030 = vmatmul.f32.gmra.mxu0 %v1916
        %v2031 = vpop.f32.mrf.mxu0
        %v2032 = vadd.f32 %v1820, %v2031
        %2033 = vmatmul.f32.gmra.mxu0 %v1919
        %v2034 = vpop.f32.mrf.mxu0
        %v2035 = vadd.f32 %v1823, %v2034
        %2036 = vmatmul.f32.gmra.mxu0 %v1922
        %v2037 = vpop.f32.mrf.mxu0
        %v2038 = vadd.f32 %v1826, %v2037
        %2039 = vmatmul.f32.gmra.mxu0 %v1925
        %v2040 = vpop.f32.mrf.mxu0
        %v2041 = vadd.f32 %v1829, %v2040
        %2042 = vmatmul.f32.gmra.mxu0 %v1928
        %v2043 = vpop.f32.mrf.mxu0
        %v2044 = vadd.f32 %v1832, %v2043
        %2045 = vmatmul.f32.gmra.mxu0 %v1931
        %v2046 = vpop.f32.mrf.mxu0
        %v2047 = vadd.f32 %v1835, %v2046
        %2048 = vmatmul.f32.gmra.mxu0 %v1934
        %v2049 = vpop.f32.mrf.mxu0
        %v2050 = vadd.f32 %v1838, %v2049
        %2051 = vmatmul.f32.gmra.mxu0 %v1937
        %v2052 = vpop.f32.mrf.mxu0
        %v2053 = vadd.f32 %v1841, %v2052
        %2054 = vmatmul.f32.gmra.mxu0 %v1940
        %v2055 = vpop.f32.mrf.mxu0
        %v2056 = vadd.f32 %v1844, %v2055
        %2057 = vdwg.mxu0
        %v2058 = vld [vmem:[%s14] sm:$0x1]
        %v2060 = vperm.slane %v2058, 0
        %v2062 = vadd.f32 %v1963, %v2060
        %v2063 = vadd.f32 %v1966, %v2060
        %v2064 = vadd.f32 %v1969, %v2060
        %v2065 = vadd.f32 %v1972, %v2060
        %v2066 = vadd.f32 %v1975, %v2060
        %v2067 = vadd.f32 %v1978, %v2060
        %v2068 = vadd.f32 %v1981, %v2060
        %v2069 = vadd.f32 %v1984, %v2060
        %v2070 = vadd.f32 %v1987, %v2060
        %v2071 = vadd.f32 %v1990, %v2060
        %v2072 = vadd.f32 %v1993, %v2060
        %v2073 = vadd.f32 %v1996, %v2060
        %v2074 = vadd.f32 %v1999, %v2060
        %v2075 = vadd.f32 %v2002, %v2060
        %v2076 = vadd.f32 %v2005, %v2060
        %v2077 = vadd.f32 %v2008, %v2060
        %v2078 = vadd.f32 %v2011, %v2060
        %v2079 = vadd.f32 %v2014, %v2060
        %v2080 = vadd.f32 %v2017, %v2060
        %v2081 = vadd.f32 %v2020, %v2060
        %v2082 = vadd.f32 %v2023, %v2060
        %v2083 = vadd.f32 %v2026, %v2060
        %v2084 = vadd.f32 %v2029, %v2060
        %v2085 = vadd.f32 %v2032, %v2060
        %v2086 = vadd.f32 %v2035, %v2060
        %v2087 = vadd.f32 %v2038, %v2060
        %v2088 = vadd.f32 %v2041, %v2060
        %v2089 = vadd.f32 %v2044, %v2060
        %v2090 = vadd.f32 %v2047, %v2060
        %v2091 = vadd.f32 %v2050, %v2060
        %v2092 = vadd.f32 %v2053, %v2060
        %v2093 = vadd.f32 %v2056, %v2060
        %v2094 = vmax.f32 %v2062, 0.0
        %v2095 = vmax.f32 %v2063, 0.0
        %v2096 = vmax.f32 %v2064, 0.0
        %v2097 = vmax.f32 %v2065, 0.0
        %v2098 = vmax.f32 %v2066, 0.0
        %v2099 = vmax.f32 %v2067, 0.0
        %v2100 = vmax.f32 %v2068, 0.0
        %v2101 = vmax.f32 %v2069, 0.0
        %v2102 = vmax.f32 %v2070, 0.0
        %v2103 = vmax.f32 %v2071, 0.0
        %v2104 = vmax.f32 %v2072, 0.0
        %v2105 = vmax.f32 %v2073, 0.0
        %v2106 = vmax.f32 %v2074, 0.0
        %v2107 = vmax.f32 %v2075, 0.0
        %v2108 = vmax.f32 %v2076, 0.0
        %v2109 = vmax.f32 %v2077, 0.0
        %v2110 = vmax.f32 %v2078, 0.0
        %v2111 = vmax.f32 %v2079, 0.0
        %v2112 = vmax.f32 %v2080, 0.0
        %v2113 = vmax.f32 %v2081, 0.0
        %v2114 = vmax.f32 %v2082, 0.0
        %v2115 = vmax.f32 %v2083, 0.0
        %v2116 = vmax.f32 %v2084, 0.0
        %v2117 = vmax.f32 %v2085, 0.0
        %v2118 = vmax.f32 %v2086, 0.0
        %v2119 = vmax.f32 %v2087, 0.0
        %v2120 = vmax.f32 %v2088, 0.0
        %v2121 = vmax.f32 %v2089, 0.0
        %v2122 = vmax.f32 %v2090, 0.0
        %v2123 = vmax.f32 %v2091, 0.0
        %v2124 = vmax.f32 %v2092, 0.0
        %v2125 = vmax.f32 %v2093, 0.0
        %v2126 = vld [vmem:[%s15] sm:$0xff]
        %v2127 = vld [vmem:[%s15 + $0x8] sm:$0xff]
        %v2128 = vld [vmem:[%s16] sm:$0x1]
        %v2130 = vperm.slane %v2128, 0
        %v2133 = vsel %vm1154, %v2094, 0
        %v2136 = vsel %vm1154, %v2095, 0
        %v2139 = vsel %vm1154, %v2096, 0
        %v2142 = vsel %vm1154, %v2097, 0
        %v2145 = vsel %vm1154, %v2098, 0
        %v2148 = vsel %vm1154, %v2099, 0
        %v2151 = vsel %vm1154, %v2100, 0
        %v2154 = vsel %vm1154, %v2101, 0
        %v2157 = vsel %vm1154, %v2102, 0
        %v2160 = vsel %vm1154, %v2103, 0
        %v2163 = vsel %vm1154, %v2104, 0
        %v2166 = vsel %vm1154, %v2105, 0
        %v2169 = vsel %vm1154, %v2106, 0
        %v2172 = vsel %vm1154, %v2107, 0
        %v2175 = vsel %vm1154, %v2108, 0
        %v2178 = vsel %vm1154, %v2109, 0
        %v2181 = vsel %vm1154, %v2110, 0
        %v2184 = vsel %vm1154, %v2111, 0
        %v2187 = vsel %vm1154, %v2112, 0
        %v2190 = vsel %vm1154, %v2113, 0
        %v2193 = vsel %vm1154, %v2114, 0
        %v2196 = vsel %vm1154, %v2115, 0
        %v2199 = vsel %vm1154, %v2116, 0
        %v2202 = vsel %vm1154, %v2117, 0
        %v2205 = vsel %vm1154, %v2118, 0
        %v2208 = vsel %vm1154, %v2119, 0
        %v2211 = vsel %vm1154, %v2120, 0
        %v2214 = vsel %vm1154, %v2121, 0
        %v2217 = vsel %vm1154, %v2122, 0
        %v2220 = vsel %vm1154, %v2123, 0
        %v2223 = vsel %vm1154, %v2124, 0
        %v2226 = vsel %vm1154, %v2125, 0
        %2228 = vmatpush.msra.mxu0 0.0
        %2229 = vmatpush.msra.mxu0 0.0
        %2230 = vmatpush.msra.mxu0 0.0
        %2231 = vmatpush.msra.mxu0 0.0
        %2232 = vmatpush.msra.mxu0 0.0
        %2233 = vmatpush.msra.mxu0 0.0
        %2234 = vmatpush.msra.mxu0 0.0
        %2235 = vmatpush.msra.mxu0 0.0
        %2236 = vmatpush.msra.mxu0 0.0
        %2237 = vmatpush.msra.mxu0 0.0
        %2238 = vmatpush.msra.mxu0 0.0
        %2239 = vmatpush.msra.mxu0 0.0
        %2240 = vmatpush.msra.mxu0 0.0
        %2241 = vmatpush.msra.mxu0 0.0
        %2242 = vmatpush.msra.mxu0 %v2127
        %2243 = vmatpush.msra.mxu0 %v2126
        %2244 = vmatmul.f32.gmra.mxu0 %v2133
        %v2245 = vpop.f32.mrf.mxu0
        %v2246 = vadd.f32 %v2130, %v2245
        %2247 = vmatmul.f32.gmra.mxu0 %v2136
        %v2248 = vpop.f32.mrf.mxu0
        %v2249 = vadd.f32 %v2130, %v2248
        %2250 = vmatmul.f32.gmra.mxu0 %v2139
        %v2251 = vpop.f32.mrf.mxu0
        %v2252 = vadd.f32 %v2130, %v2251
        %2253 = vmatmul.f32.gmra.mxu0 %v2142
        %v2254 = vpop.f32.mrf.mxu0
        %v2255 = vadd.f32 %v2130, %v2254
        %2256 = vmatmul.f32.gmra.mxu0 %v2145
        %v2257 = vpop.f32.mrf.mxu0
        %v2258 = vadd.f32 %v2130, %v2257
        %2259 = vmatmul.f32.gmra.mxu0 %v2148
        %v2260 = vpop.f32.mrf.mxu0
        %v2261 = vadd.f32 %v2130, %v2260
        %2262 = vmatmul.f32.gmra.mxu0 %v2151
        %v2263 = vpop.f32.mrf.mxu0
        %v2264 = vadd.f32 %v2130, %v2263
        %2265 = vmatmul.f32.gmra.mxu0 %v2154
        %v2266 = vpop.f32.mrf.mxu0
        %v2267 = vadd.f32 %v2130, %v2266
        %2268 = vmatmul.f32.gmra.mxu0 %v2157
        %v2269 = vpop.f32.mrf.mxu0
        %v2270 = vadd.f32 %v2130, %v2269
        %2271 = vmatmul.f32.gmra.mxu0 %v2160
        %v2272 = vpop.f32.mrf.mxu0
        %v2273 = vadd.f32 %v2130, %v2272
        %2274 = vmatmul.f32.gmra.mxu0 %v2163
        %v2275 = vpop.f32.mrf.mxu0
        %v2276 = vadd.f32 %v2130, %v2275
        %2277 = vmatmul.f32.gmra.mxu0 %v2166
        %v2278 = vpop.f32.mrf.mxu0
        %v2279 = vadd.f32 %v2130, %v2278
        %2280 = vmatmul.f32.gmra.mxu0 %v2169
        %v2281 = vpop.f32.mrf.mxu0
        %v2282 = vadd.f32 %v2130, %v2281
        %2283 = vmatmul.f32.gmra.mxu0 %v2172
        %v2284 = vpop.f32.mrf.mxu0
        %v2285 = vadd.f32 %v2130, %v2284
        %2286 = vmatmul.f32.gmra.mxu0 %v2175
        %v2287 = vpop.f32.mrf.mxu0
        %v2288 = vadd.f32 %v2130, %v2287
        %2289 = vmatmul.f32.gmra.mxu0 %v2178
        %v2290 = vpop.f32.mrf.mxu0
        %v2291 = vadd.f32 %v2130, %v2290
        %2292 = vmatmul.f32.gmra.mxu0 %v2181
        %v2293 = vpop.f32.mrf.mxu0
        %v2294 = vadd.f32 %v2130, %v2293
        %2295 = vmatmul.f32.gmra.mxu0 %v2184
        %v2296 = vpop.f32.mrf.mxu0
        %v2297 = vadd.f32 %v2130, %v2296
        %2298 = vmatmul.f32.gmra.mxu0 %v2187
        %v2299 = vpop.f32.mrf.mxu0
        %v2300 = vadd.f32 %v2130, %v2299
        %2301 = vmatmul.f32.gmra.mxu0 %v2190
        %v2302 = vpop.f32.mrf.mxu0
        %v2303 = vadd.f32 %v2130, %v2302
        %2304 = vmatmul.f32.gmra.mxu0 %v2193
        %v2305 = vpop.f32.mrf.mxu0
        %v2306 = vadd.f32 %v2130, %v2305
        %2307 = vmatmul.f32.gmra.mxu0 %v2196
        %v2308 = vpop.f32.mrf.mxu0
        %v2309 = vadd.f32 %v2130, %v2308
        %2310 = vmatmul.f32.gmra.mxu0 %v2199
        %v2311 = vpop.f32.mrf.mxu0
        %v2312 = vadd.f32 %v2130, %v2311
        %2313 = vmatmul.f32.gmra.mxu0 %v2202
        %v2314 = vpop.f32.mrf.mxu0
        %v2315 = vadd.f32 %v2130, %v2314
        %2316 = vmatmul.f32.gmra.mxu0 %v2205
        %v2317 = vpop.f32.mrf.mxu0
        %v2318 = vadd.f32 %v2130, %v2317
        %2319 = vmatmul.f32.gmra.mxu0 %v2208
        %v2320 = vpop.f32.mrf.mxu0
        %v2321 = vadd.f32 %v2130, %v2320
        %2322 = vmatmul.f32.gmra.mxu0 %v2211
        %v2323 = vpop.f32.mrf.mxu0
        %v2324 = vadd.f32 %v2130, %v2323
        %2325 = vmatmul.f32.gmra.mxu0 %v2214
        %v2326 = vpop.f32.mrf.mxu0
        %v2327 = vadd.f32 %v2130, %v2326
        %2328 = vmatmul.f32.gmra.mxu0 %v2217
        %v2329 = vpop.f32.mrf.mxu0
        %v2330 = vadd.f32 %v2130, %v2329
        %2331 = vmatmul.f32.gmra.mxu0 %v2220
        %v2332 = vpop.f32.mrf.mxu0
        %v2333 = vadd.f32 %v2130, %v2332
        %2334 = vmatmul.f32.gmra.mxu0 %v2223
        %v2335 = vpop.f32.mrf.mxu0
        %v2336 = vadd.f32 %v2130, %v2335
        %2337 = vmatmul.f32.gmra.mxu0 %v2226
        %v2338 = vpop.f32.mrf.mxu0
        %v2339 = vadd.f32 %v2130, %v2338
        %2340 = vdwg.mxu0
        %v2341 = vmax.f32 %v2246, 0.0
        %v2342 = vmax.f32 %v2249, 0.0
        %v2343 = vmax.f32 %v2252, 0.0
        %v2344 = vmax.f32 %v2255, 0.0
        %v2345 = vmax.f32 %v2258, 0.0
        %v2346 = vmax.f32 %v2261, 0.0
        %v2347 = vmax.f32 %v2264, 0.0
        %v2348 = vmax.f32 %v2267, 0.0
        %v2349 = vmax.f32 %v2270, 0.0
        %v2350 = vmax.f32 %v2273, 0.0
        %v2351 = vmax.f32 %v2276, 0.0
        %v2352 = vmax.f32 %v2279, 0.0
        %v2353 = vmax.f32 %v2282, 0.0
        %v2354 = vmax.f32 %v2285, 0.0
        %v2355 = vmax.f32 %v2288, 0.0
        %v2356 = vmax.f32 %v2291, 0.0
        %v2357 = vmax.f32 %v2294, 0.0
        %v2358 = vmax.f32 %v2297, 0.0
        %v2359 = vmax.f32 %v2300, 0.0
        %v2360 = vmax.f32 %v2303, 0.0
        %v2361 = vmax.f32 %v2306, 0.0
        %v2362 = vmax.f32 %v2309, 0.0
        %v2363 = vmax.f32 %v2312, 0.0
        %v2364 = vmax.f32 %v2315, 0.0
        %v2365 = vmax.f32 %v2318, 0.0
        %v2366 = vmax.f32 %v2321, 0.0
        %v2367 = vmax.f32 %v2324, 0.0
        %v2368 = vmax.f32 %v2327, 0.0
        %v2369 = vmax.f32 %v2330, 0.0
        %v2370 = vmax.f32 %v2333, 0.0
        %v2371 = vmax.f32 %v2336, 0.0
        %v2372 = vmax.f32 %v2339, 0.0
        %v2373 = vld [vmem:[%s17] sm:$0xff]
        %v2374 = vld [vmem:[%s17 + $0x8] sm:$0xff]
        %v2375 = vld [vmem:[%s18] sm:$0x1]
        %v2377 = vperm.slane %v2375, 0
        %v2380 = vsel %vm1154, %v2341, 0
        %v2383 = vsel %vm1154, %v2342, 0
        %v2386 = vsel %vm1154, %v2343, 0
        %v2389 = vsel %vm1154, %v2344, 0
        %v2392 = vsel %vm1154, %v2345, 0
        %v2395 = vsel %vm1154, %v2346, 0
        %v2398 = vsel %vm1154, %v2347, 0
        %v2401 = vsel %vm1154, %v2348, 0
        %v2404 = vsel %vm1154, %v2349, 0
        %v2407 = vsel %vm1154, %v2350, 0
        %v2410 = vsel %vm1154, %v2351, 0
        %v2413 = vsel %vm1154, %v2352, 0
        %v2416 = vsel %vm1154, %v2353, 0
        %v2419 = vsel %vm1154, %v2354, 0
        %v2422 = vsel %vm1154, %v2355, 0
        %v2425 = vsel %vm1154, %v2356, 0
        %v2428 = vsel %vm1154, %v2357, 0
        %v2431 = vsel %vm1154, %v2358, 0
        %v2434 = vsel %vm1154, %v2359, 0
        %v2437 = vsel %vm1154, %v2360, 0
        %v2440 = vsel %vm1154, %v2361, 0
        %v2443 = vsel %vm1154, %v2362, 0
        %v2446 = vsel %vm1154, %v2363, 0
        %v2449 = vsel %vm1154, %v2364, 0
        %v2452 = vsel %vm1154, %v2365, 0
        %v2455 = vsel %vm1154, %v2366, 0
        %v2458 = vsel %vm1154, %v2367, 0
        %v2461 = vsel %vm1154, %v2368, 0
        %v2464 = vsel %vm1154, %v2369, 0
        %v2467 = vsel %vm1154, %v2370, 0
        %v2470 = vsel %vm1154, %v2371, 0
        %v2473 = vsel %vm1154, %v2372, 0
        %2475 = vmatpush.msra.mxu0 0.0
        %2476 = vmatpush.msra.mxu0 0.0
        %2477 = vmatpush.msra.mxu0 0.0
        %2478 = vmatpush.msra.mxu0 0.0
        %2479 = vmatpush.msra.mxu0 0.0
        %2480 = vmatpush.msra.mxu0 0.0
        %2481 = vmatpush.msra.mxu0 0.0
        %2482 = vmatpush.msra.mxu0 0.0
        %2483 = vmatpush.msra.mxu0 0.0
        %2484 = vmatpush.msra.mxu0 0.0
        %2485 = vmatpush.msra.mxu0 0.0
        %2486 = vmatpush.msra.mxu0 0.0
        %2487 = vmatpush.msra.mxu0 0.0
        %2488 = vmatpush.msra.mxu0 0.0
        %2489 = vmatpush.msra.mxu0 %v2374
        %2490 = vmatpush.msra.mxu0 %v2373
        %2491 = vmatmul.f32.gmra.mxu0 %v2380
        %v2492 = vpop.f32.mrf.mxu0
        %v2493 = vadd.f32 %v2377, %v2492
        %2494 = vmatmul.f32.gmra.mxu0 %v2383
        %v2495 = vpop.f32.mrf.mxu0
        %v2496 = vadd.f32 %v2377, %v2495
        %2497 = vmatmul.f32.gmra.mxu0 %v2386
        %v2498 = vpop.f32.mrf.mxu0
        %v2499 = vadd.f32 %v2377, %v2498
        %2500 = vmatmul.f32.gmra.mxu0 %v2389
        %v2501 = vpop.f32.mrf.mxu0
        %v2502 = vadd.f32 %v2377, %v2501
        %2503 = vmatmul.f32.gmra.mxu0 %v2392
        %v2504 = vpop.f32.mrf.mxu0
        %v2505 = vadd.f32 %v2377, %v2504
        %2506 = vmatmul.f32.gmra.mxu0 %v2395
        %v2507 = vpop.f32.mrf.mxu0
        %v2508 = vadd.f32 %v2377, %v2507
        %2509 = vmatmul.f32.gmra.mxu0 %v2398
        %v2510 = vpop.f32.mrf.mxu0
        %v2511 = vadd.f32 %v2377, %v2510
        %2512 = vmatmul.f32.gmra.mxu0 %v2401
        %v2513 = vpop.f32.mrf.mxu0
        %v2514 = vadd.f32 %v2377, %v2513
        %2515 = vmatmul.f32.gmra.mxu0 %v2404
        %v2516 = vpop.f32.mrf.mxu0
        %v2517 = vadd.f32 %v2377, %v2516
        %2518 = vmatmul.f32.gmra.mxu0 %v2407
        %v2519 = vpop.f32.mrf.mxu0
        %v2520 = vadd.f32 %v2377, %v2519
        %2521 = vmatmul.f32.gmra.mxu0 %v2410
        %v2522 = vpop.f32.mrf.mxu0
        %v2523 = vadd.f32 %v2377, %v2522
        %2524 = vmatmul.f32.gmra.mxu0 %v2413
        %v2525 = vpop.f32.mrf.mxu0
        %v2526 = vadd.f32 %v2377, %v2525
        %2527 = vmatmul.f32.gmra.mxu0 %v2416
        %v2528 = vpop.f32.mrf.mxu0
        %v2529 = vadd.f32 %v2377, %v2528
        %2530 = vmatmul.f32.gmra.mxu0 %v2419
        %v2531 = vpop.f32.mrf.mxu0
        %v2532 = vadd.f32 %v2377, %v2531
        %2533 = vmatmul.f32.gmra.mxu0 %v2422
        %v2534 = vpop.f32.mrf.mxu0
        %v2535 = vadd.f32 %v2377, %v2534
        %2536 = vmatmul.f32.gmra.mxu0 %v2425
        %v2537 = vpop.f32.mrf.mxu0
        %v2538 = vadd.f32 %v2377, %v2537
        %2539 = vmatmul.f32.gmra.mxu0 %v2428
        %v2540 = vpop.f32.mrf.mxu0
        %v2541 = vadd.f32 %v2377, %v2540
        %2542 = vmatmul.f32.gmra.mxu0 %v2431
        %v2543 = vpop.f32.mrf.mxu0
        %v2544 = vadd.f32 %v2377, %v2543
        %2545 = vmatmul.f32.gmra.mxu0 %v2434
        %v2546 = vpop.f32.mrf.mxu0
        %v2547 = vadd.f32 %v2377, %v2546
        %2548 = vmatmul.f32.gmra.mxu0 %v2437
        %v2549 = vpop.f32.mrf.mxu0
        %v2550 = vadd.f32 %v2377, %v2549
        %2551 = vmatmul.f32.gmra.mxu0 %v2440
        %v2552 = vpop.f32.mrf.mxu0
        %v2553 = vadd.f32 %v2377, %v2552
        %2554 = vmatmul.f32.gmra.mxu0 %v2443
        %v2555 = vpop.f32.mrf.mxu0
        %v2556 = vadd.f32 %v2377, %v2555
        %2557 = vmatmul.f32.gmra.mxu0 %v2446
        %v2558 = vpop.f32.mrf.mxu0
        %v2559 = vadd.f32 %v2377, %v2558
        %2560 = vmatmul.f32.gmra.mxu0 %v2449
        %v2561 = vpop.f32.mrf.mxu0
        %v2562 = vadd.f32 %v2377, %v2561
        %2563 = vmatmul.f32.gmra.mxu0 %v2452
        %v2564 = vpop.f32.mrf.mxu0
        %v2565 = vadd.f32 %v2377, %v2564
        %2566 = vmatmul.f32.gmra.mxu0 %v2455
        %v2567 = vpop.f32.mrf.mxu0
        %v2568 = vadd.f32 %v2377, %v2567
        %2569 = vmatmul.f32.gmra.mxu0 %v2458
        %v2570 = vpop.f32.mrf.mxu0
        %v2571 = vadd.f32 %v2377, %v2570
        %2572 = vmatmul.f32.gmra.mxu0 %v2461
        %v2573 = vpop.f32.mrf.mxu0
        %v2574 = vadd.f32 %v2377, %v2573
        %2575 = vmatmul.f32.gmra.mxu0 %v2464
        %v2576 = vpop.f32.mrf.mxu0
        %v2577 = vadd.f32 %v2377, %v2576
        %2578 = vmatmul.f32.gmra.mxu0 %v2467
        %v2579 = vpop.f32.mrf.mxu0
        %v2580 = vadd.f32 %v2377, %v2579
        %2581 = vmatmul.f32.gmra.mxu0 %v2470
        %v2582 = vpop.f32.mrf.mxu0
        %v2583 = vadd.f32 %v2377, %v2582
        %2584 = vmatmul.f32.gmra.mxu0 %v2473
        %v2585 = vpop.f32.mrf.mxu0
        %v2586 = vadd.f32 %v2377, %v2585
        %2587 = vdwg.mxu0
        %v2588 = vmax.f32 %v2493, 0.0
        %v2589 = vmax.f32 %v2496, 0.0
        %v2590 = vmax.f32 %v2499, 0.0
        %v2591 = vmax.f32 %v2502, 0.0
        %v2592 = vmax.f32 %v2505, 0.0
        %v2593 = vmax.f32 %v2508, 0.0
        %v2594 = vmax.f32 %v2511, 0.0
        %v2595 = vmax.f32 %v2514, 0.0
        %v2596 = vmax.f32 %v2517, 0.0
        %v2597 = vmax.f32 %v2520, 0.0
        %v2598 = vmax.f32 %v2523, 0.0
        %v2599 = vmax.f32 %v2526, 0.0
        %v2600 = vmax.f32 %v2529, 0.0
        %v2601 = vmax.f32 %v2532, 0.0
        %v2602 = vmax.f32 %v2535, 0.0
        %v2603 = vmax.f32 %v2538, 0.0
        %v2604 = vmax.f32 %v2541, 0.0
        %v2605 = vmax.f32 %v2544, 0.0
        %v2606 = vmax.f32 %v2547, 0.0
        %v2607 = vmax.f32 %v2550, 0.0
        %v2608 = vmax.f32 %v2553, 0.0
        %v2609 = vmax.f32 %v2556, 0.0
        %v2610 = vmax.f32 %v2559, 0.0
        %v2611 = vmax.f32 %v2562, 0.0
        %v2612 = vmax.f32 %v2565, 0.0
        %v2613 = vmax.f32 %v2568, 0.0
        %v2614 = vmax.f32 %v2571, 0.0
        %v2615 = vmax.f32 %v2574, 0.0
        %v2616 = vmax.f32 %v2577, 0.0
        %v2617 = vmax.f32 %v2580, 0.0
        %v2618 = vmax.f32 %v2583, 0.0
        %v2619 = vmax.f32 %v2586, 0.0
        %v2620 = vsel %vm1419, %v2588, -inf
        %v2621 = vsel %vm1419, %v2589, -inf
        %v2622 = vmax.f32 %v2620, %v2621
        %v2623 = vrot.slane %v2622, 4
        %v2624 = vmax.f32 %v2622, %v2623
        %v2625 = vrot.slane %v2624, 2
        %v2626 = vmax.f32 %v2624, %v2625
        %v2627 = vrot.slane %v2626, 1
        %v2628 = vmax.f32 %v2626, %v2627
        %v2629 = vsel %vm1419, %v2590, -inf
        %v2630 = vsel %vm1419, %v2591, -inf
        %v2631 = vmax.f32 %v2629, %v2630
        %v2632 = vrot.slane %v2631, 4
        %v2633 = vmax.f32 %v2631, %v2632
        %v2634 = vrot.slane %v2633, 2
        %v2635 = vmax.f32 %v2633, %v2634
        %v2636 = vrot.slane %v2635, 1
        %v2637 = vmax.f32 %v2635, %v2636
        %v2638 = vsel %vm1419, %v2592, -inf
        %v2639 = vsel %vm1419, %v2593, -inf
        %v2640 = vmax.f32 %v2638, %v2639
        %v2641 = vrot.slane %v2640, 4
        %v2642 = vmax.f32 %v2640, %v2641
        %v2643 = vrot.slane %v2642, 2
        %v2644 = vmax.f32 %v2642, %v2643
        %v2645 = vrot.slane %v2644, 1
        %v2646 = vmax.f32 %v2644, %v2645
        %v2647 = vsel %vm1419, %v2594, -inf
        %v2648 = vsel %vm1419, %v2595, -inf
        %v2649 = vmax.f32 %v2647, %v2648
        %v2650 = vrot.slane %v2649, 4
        %v2651 = vmax.f32 %v2649, %v2650
        %v2652 = vrot.slane %v2651, 2
        %v2653 = vmax.f32 %v2651, %v2652
        %v2654 = vrot.slane %v2653, 1
        %v2655 = vmax.f32 %v2653, %v2654
        %v2656 = vsel %vm1419, %v2596, -inf
        %v2657 = vsel %vm1419, %v2597, -inf
        %v2658 = vmax.f32 %v2656, %v2657
        %v2659 = vrot.slane %v2658, 4
        %v2660 = vmax.f32 %v2658, %v2659
        %v2661 = vrot.slane %v2660, 2
        %v2662 = vmax.f32 %v2660, %v2661
        %v2663 = vrot.slane %v2662, 1
        %v2664 = vmax.f32 %v2662, %v2663
        %v2665 = vsel %vm1419, %v2598, -inf
        %v2666 = vsel %vm1419, %v2599, -inf
        %v2667 = vmax.f32 %v2665, %v2666
        %v2668 = vrot.slane %v2667, 4
        %v2669 = vmax.f32 %v2667, %v2668
        %v2670 = vrot.slane %v2669, 2
        %v2671 = vmax.f32 %v2669, %v2670
        %v2672 = vrot.slane %v2671, 1
        %v2673 = vmax.f32 %v2671, %v2672
        %v2674 = vsel %vm1419, %v2600, -inf
        %v2675 = vsel %vm1419, %v2601, -inf
        %v2676 = vmax.f32 %v2674, %v2675
        %v2677 = vrot.slane %v2676, 4
        %v2678 = vmax.f32 %v2676, %v2677
        %v2679 = vrot.slane %v2678, 2
        %v2680 = vmax.f32 %v2678, %v2679
        %v2681 = vrot.slane %v2680, 1
        %v2682 = vmax.f32 %v2680, %v2681
        %v2683 = vsel %vm1419, %v2602, -inf
        %v2684 = vsel %vm1419, %v2603, -inf
        %v2685 = vmax.f32 %v2683, %v2684
        %v2686 = vrot.slane %v2685, 4
        %v2687 = vmax.f32 %v2685, %v2686
        %v2688 = vrot.slane %v2687, 2
        %v2689 = vmax.f32 %v2687, %v2688
        %v2690 = vrot.slane %v2689, 1
        %v2691 = vmax.f32 %v2689, %v2690
        %v2692 = vsel %vm1419, %v2604, -inf
        %v2693 = vsel %vm1419, %v2605, -inf
        %v2694 = vmax.f32 %v2692, %v2693
        %v2695 = vrot.slane %v2694, 4
        %v2696 = vmax.f32 %v2694, %v2695
        %v2697 = vrot.slane %v2696, 2
        %v2698 = vmax.f32 %v2696, %v2697
        %v2699 = vrot.slane %v2698, 1
        %v2700 = vmax.f32 %v2698, %v2699
        %v2701 = vsel %vm1419, %v2606, -inf
        %v2702 = vsel %vm1419, %v2607, -inf
        %v2703 = vmax.f32 %v2701, %v2702
        %v2704 = vrot.slane %v2703, 4
        %v2705 = vmax.f32 %v2703, %v2704
        %v2706 = vrot.slane %v2705, 2
        %v2707 = vmax.f32 %v2705, %v2706
        %v2708 = vrot.slane %v2707, 1
        %v2709 = vmax.f32 %v2707, %v2708
        %v2710 = vsel %vm1419, %v2608, -inf
        %v2711 = vsel %vm1419, %v2609, -inf
        %v2712 = vmax.f32 %v2710, %v2711
        %v2713 = vrot.slane %v2712, 4
        %v2714 = vmax.f32 %v2712, %v2713
        %v2715 = vrot.slane %v2714, 2
        %v2716 = vmax.f32 %v2714, %v2715
        %v2717 = vrot.slane %v2716, 1
        %v2718 = vmax.f32 %v2716, %v2717
        %v2719 = vsel %vm1419, %v2610, -inf
        %v2720 = vsel %vm1419, %v2611, -inf
        %v2721 = vmax.f32 %v2719, %v2720
        %v2722 = vrot.slane %v2721, 4
        %v2723 = vmax.f32 %v2721, %v2722
        %v2724 = vrot.slane %v2723, 2
        %v2725 = vmax.f32 %v2723, %v2724
        %v2726 = vrot.slane %v2725, 1
        %v2727 = vmax.f32 %v2725, %v2726
        %v2728 = vsel %vm1419, %v2612, -inf
        %v2729 = vsel %vm1419, %v2613, -inf
        %v2730 = vmax.f32 %v2728, %v2729
        %v2731 = vrot.slane %v2730, 4
        %v2732 = vmax.f32 %v2730, %v2731
        %v2733 = vrot.slane %v2732, 2
        %v2734 = vmax.f32 %v2732, %v2733
        %v2735 = vrot.slane %v2734, 1
        %v2736 = vmax.f32 %v2734, %v2735
        %v2737 = vsel %vm1419, %v2614, -inf
        %v2738 = vsel %vm1419, %v2615, -inf
        %v2739 = vmax.f32 %v2737, %v2738
        %v2740 = vrot.slane %v2739, 4
        %v2741 = vmax.f32 %v2739, %v2740
        %v2742 = vrot.slane %v2741, 2
        %v2743 = vmax.f32 %v2741, %v2742
        %v2744 = vrot.slane %v2743, 1
        %v2745 = vmax.f32 %v2743, %v2744
        %v2746 = vsel %vm1419, %v2616, -inf
        %v2747 = vsel %vm1419, %v2617, -inf
        %v2748 = vmax.f32 %v2746, %v2747
        %v2749 = vrot.slane %v2748, 4
        %v2750 = vmax.f32 %v2748, %v2749
        %v2751 = vrot.slane %v2750, 2
        %v2752 = vmax.f32 %v2750, %v2751
        %v2753 = vrot.slane %v2752, 1
        %v2754 = vmax.f32 %v2752, %v2753
        %v2755 = vsel %vm1419, %v2618, -inf
        %v2756 = vsel %vm1419, %v2619, -inf
        %v2757 = vmax.f32 %v2755, %v2756
        %v2758 = vrot.slane %v2757, 4
        %v2759 = vmax.f32 %v2757, %v2758
        %v2760 = vrot.slane %v2759, 2
        %v2761 = vmax.f32 %v2759, %v2760
        %v2762 = vrot.slane %v2761, 1
        %v2763 = vmax.f32 %v2761, %v2762
        %v2764 = vld [vmem:[%s20] sm:$0xff]
        %v2765 = vld [vmem:[%s20 + $0x8] sm:$0xff]
        %v2766 = vld [vmem:[%s20 + $0x10] sm:$0xff]
        %v2767 = vld [vmem:[%s20 + $0x18] sm:$0xff]
        %vm2784 = vcmask 1041409
        %v2785 = vsel %vm2784, %v2637, %v2628
        %vm2786 = vcmask 1042434
        %v2787 = vsel %vm2786, %v2646, %v2785
        %vm2788 = vcmask 1043459
        %v2789 = vsel %vm2788, %v2655, %v2787
        %vm2790 = vcmask 1044484
        %v2791 = vsel %vm2790, %v2664, %v2789
        %vm2792 = vcmask 1045509
        %v2793 = vsel %vm2792, %v2673, %v2791
        %vm2794 = vcmask 1046534
        %v2795 = vsel %vm2794, %v2682, %v2793
        %vm2796 = vcmask 1047559
        %v2797 = vsel %vm2796, %v2691, %v2795
        %v2798 = vsel %vm2784, %v2709, %v2700
        %v2799 = vsel %vm2786, %v2718, %v2798
        %v2800 = vsel %vm2788, %v2727, %v2799
        %v2801 = vsel %vm2790, %v2736, %v2800
        %v2802 = vsel %vm2792, %v2745, %v2801
        %v2803 = vsel %vm2794, %v2754, %v2802
        %v2804 = vsel %vm2796, %v2763, %v2803
        %v2805 = vsel %vm1419, %v2797, 0
        %v2807 = vsel %vm1419, %v2804, 0
        %2809 = vmatpush.msra.mxu0 0.0
        %2810 = vmatpush.msra.mxu0 0.0
        %2811 = vmatpush.msra.mxu0 0.0
        %2812 = vmatpush.msra.mxu0 0.0
        %2813 = vmatpush.msra.mxu0 0.0
        %2814 = vmatpush.msra.mxu0 0.0
        %2815 = vmatpush.msra.mxu0 0.0
        %2816 = vmatpush.msra.mxu0 0.0
        %2817 = vmatpush.msra.mxu0 0.0
        %2818 = vmatpush.msra.mxu0 0.0
        %2819 = vmatpush.msra.mxu0 0.0
        %2820 = vmatpush.msra.mxu0 0.0
        %2821 = vmatpush.msra.mxu0 %v2767
        %2822 = vmatpush.msra.mxu0 %v2766
        %2823 = vmatpush.msra.mxu0 %v2765
        %2824 = vmatpush.msra.mxu0 %v2764
        %2825 = vmatmul.f32.gmra.mxu0 %v2805
        %v2826 = vpop.f32.mrf.mxu0
        %v2827 = vadd.f32 0.0, %v2826
        %2828 = vmatmul.f32.gmra.mxu0 %v2807
        %v2829 = vpop.f32.mrf.mxu0
        %v2830 = vadd.f32 0.0, %v2829
        %2831 = vdwg.mxu0
        %v2848 = vsel %vm2784, %v1433, %v1426
        %v2849 = vsel %vm2786, %v1440, %v2848
        %v2850 = vsel %vm2788, %v1447, %v2849
        %v2851 = vsel %vm2790, %v1454, %v2850
        %v2852 = vsel %vm2792, %v1461, %v2851
        %v2853 = vsel %vm2794, %v1468, %v2852
        %v2854 = vsel %vm2796, %v1475, %v2853
        %v2855 = vsel %vm2784, %v1489, %v1482
        %v2856 = vsel %vm2786, %v1496, %v2855
        %v2857 = vsel %vm2788, %v1503, %v2856
        %v2858 = vsel %vm2790, %v1510, %v2857
        %v2859 = vsel %vm2792, %v1517, %v2858
        %v2860 = vsel %vm2794, %v1524, %v2859
        %v2861 = vsel %vm2796, %v1531, %v2860
        %v2862 = vsel %vm1419, %v2854, 0
        %v2864 = vsel %vm1419, %v2861, 0
        %2866 = vmatpush.msra.mxu0 0.0
        %2867 = vmatpush.msra.mxu0 0.0
        %2868 = vmatpush.msra.mxu0 0.0
        %2869 = vmatpush.msra.mxu0 0.0
        %2870 = vmatpush.msra.mxu0 0.0
        %2871 = vmatpush.msra.mxu0 0.0
        %2872 = vmatpush.msra.mxu0 0.0
        %2873 = vmatpush.msra.mxu0 0.0
        %2874 = vmatpush.msra.mxu0 0.0
        %2875 = vmatpush.msra.mxu0 0.0
        %2876 = vmatpush.msra.mxu0 0.0
        %2877 = vmatpush.msra.mxu0 0.0
        %2878 = vmatpush.msra.mxu0 %v1535
        %2879 = vmatpush.msra.mxu0 %v1534
        %2880 = vmatpush.msra.mxu0 %v1533
        %2881 = vmatpush.msra.mxu0 %v1532
        %2882 = vmatmul.f32.gmra.mxu0 %v2862
        %v2883 = vpop.f32.mrf.mxu0
        %v2884 = vadd.f32 %v2827, %v2883
        %2885 = vmatmul.f32.gmra.mxu0 %v2864
        %v2886 = vpop.f32.mrf.mxu0
        %v2887 = vadd.f32 %v2830, %v2886
        %2888 = vdwg.mxu0
        %v2889 = vld [vmem:[%s21] sm:$0x1]
        %v2891 = vperm.slane %v2889, 0
        %v2893 = vadd.f32 %v2884, %v2891
        %v2894 = vadd.f32 %v2887, %v2891
        %v2895 = vmax.f32 %v2893, 0.0
        %v2896 = vmax.f32 %v2894, 0.0
        %2897 = vst [vmem:[%s743] sm:$0xff] %v2895
        %2898 = vst [vmem:[%s743 + $0x8] sm:$0xff] %v2896
        %s2899 = sand.u32 %s531, 1
        %s2900 = scalar_lea.sflag [#allocation3], %s2899
        %s2901 = sand.u32 %s531, 1
        %s2902 = smul.addr %s2901, 16
        %s2903 = scalar_lea.vmem [#allocation2], %s2902
        // Predicated region
        $region109: #{_lambda_.1} parent=107 // pred_check
          %p2904 = pneg %p541
        $region110: #{_lambda_.1} parent=107 // pred_check_branch
          %2906 = sbr.rel (%p2904) target = $region112
        $region111: #{_lambda_.1} parent=107 // pred_region
          %s2907 = smul.u32 2, %s36
          %2909 = vsyncadd %s2900, 0
          %s2910 = smul.addr %s2907, 8
          %s2911 = scalar_lea.hbm %s22, %s2910
          %s2912 = sshll.u32 %s2903, 4
          %s2913 = int_to_ptr.vmem [resolvable:$true] %s2912
          %s2914 = sshll.u32 %s2911, 4
          %s2915 = int_to_ptr.hbm [resolvable:$true] %s2914
          %2920 = dma.vmem_to_hbm [thread:$0]  %s2913, 256, %s2915, %s2900, 128, 128, 8
        $region112: #{_lambda_.1} parent=107 // pred_fallthru
          _
      $region108: #{_lambda_.1} parent=5 // pred_fallthru
        _
      %p2921 = scmp.le.s32.totalorder 2, %s31
      // Predicated region
      $region113: #{_lambda_.1} parent=5 // pred_check
        %p2922 = pneg %p2921
      $region114: #{_lambda_.1} parent=5 // pred_check_branch
        %2924 = sbr.rel (%p2922) target = $region116
      $region115: #{_lambda_.1} parent=5 // pred_region
        %s2925 = ssub.s32 %s31, 2
        // Predicated region
        $region117: #{_lambda_.1} parent=115 // pred_check
          %p2926 = pneg %p547
        $region118: #{_lambda_.1} parent=115 // pred_check_branch
          %2928 = sbr.rel (%p2926) target = $region120
        $region119: #{_lambda_.1} parent=115 // pred_region
          %s2929 = sand.u32 %s532, 1
          %s2930 = scalar_lea.sflag [#allocation3], %s2929
          %s2931 = sand.u32 %s532, 1
          %s2932 = smul.addr %s2931, 16
          %s2933 = scalar_lea.vmem [#allocation2], %s2932
          %2935 = dma.done %s2930, 256
        $region120: #{_lambda_.1} parent=115 // pred_fallthru
          _
      $region116: #{_lambda_.1} parent=5 // pred_fallthru
        _
    $region6: #{_lambda_.1} parent=1 // loop_footer
      %s35 = sadd.s32 1, %s31
    $region7: #{_lambda_.1} parent=1 // loop_footer_branch
      %30 = sbr.rel target = $region3
    $region8: #{_lambda_.1} parent=1 // loop_exit
      _
    %2936 = vsyncpa [#allocation3], 1
    %s2937 = scalar_lea.sflag [#allocation3], 1
    %2938 = vsyncpa %s2937, 1

</llo_original>
